<compile_context>
chip_gen: v6e
topology: v6e:2x2x1
jax: 0.10.0
libtpu: 0.0.40
codegen_flags: <defaults>
</compile_context>

<pallas_src>
import jax
import jax.numpy as jnp
from jax.experimental import pallas as pl
from jax.experimental.pallas import tpu as pltpu


def decoder_block_kernel(x_ref, w1_ref, b1_ref, w2_ref, b2_ref, o_ref,
                         xp1_ref, xp2_ref):
    """Fused DecoderBlock for one (batch, row-tile) grid step.

    x_ref  : (1, Cin, H, W)     f32   full-image input block (constant over t)
    w1_ref : (Cout, 9*Cin)      bf16  conv1 weights, BN1 scale folded, im2col order
    b1_ref : (Cout, 1)          f32   folded BN1 bias
    w2_ref : (Cout, 9*Cout)     bf16  conv2 weights, BN2 scale folded
    b2_ref : (Cout, 1)          f32   folded BN2 bias
    o_ref  : (1, Cout, TH*W)    f32   output row tile (lane-dense)
    xp1_ref: (Cin, H+4, W+2)    bf16  zero-halo padded input scratch
    xp2_ref: (Cout, TH+2, W+2)  bf16  zero-halo padded stage-1 output scratch
    """
    Cin, H, W = x_ref.shape[1], x_ref.shape[2], x_ref.shape[3]
    Cout = w1_ref.shape[0]
    TH = o_ref.shape[2] // W                      # output rows in this tile
    t = pl.program_id(1)
    r0 = pl.multiple_of(t * TH, TH)               # first output row of tile

    # ---- stage-1 padded input: bf16 scratch, border-only zeroing ----------
    # (single f32->bf16 cast of the input; the interior overwrite makes any
    #  previous contents irrelevant, so no full-tile zeroing is needed.)
    xp1_ref[:, 2:H + 2, 1:W + 1] = x_ref[0].astype(jnp.bfloat16)
    xp1_ref[:, 0:2, :] = jnp.zeros((Cin, 2, W + 2), jnp.bfloat16)
    xp1_ref[:, H + 2:H + 4, :] = jnp.zeros((Cin, 2, W + 2), jnp.bfloat16)
    xp1_ref[:, :, 0:1] = jnp.zeros((Cin, H + 4, 1), jnp.bfloat16)
    xp1_ref[:, :, W + 1:W + 2] = jnp.zeros((Cin, H + 4, 1), jnp.bfloat16)

    # Rows needed by this tile: global x rows [r0-2, r0+TH+2) == padded rows
    # [r0, r0+TH+4) of xp1.
    slab = xp1_ref[:, pl.ds(r0, TH + 4), :]       # (Cin, TH+4, W+2) bf16

    # ---- stage 1: conv3x3 (+ folded BN) + ReLU as ONE deep MXU matmul -----
    p1 = jnp.concatenate(
        [slab[:, dy:dy + TH + 2, dx:dx + W]
         for dy in range(3) for dx in range(3)],
        axis=0).reshape(9 * Cin, (TH + 2) * W)    # bf16 im2col, K = 9*Cin
    y1 = jnp.dot(w1_ref[...], p1, preferred_element_type=jnp.float32)
    y1 = jnp.maximum(y1 + b1_ref[...], 0.0).reshape(Cout, TH + 2, W)

    # y1 rows outside the image correspond to conv2's zero padding.
    g = r0 - 1 + jax.lax.broadcasted_iota(jnp.int32, (1, TH + 2, 1), 1)
    y1 = jnp.where(jnp.logical_and(g >= 0, g < H), y1, 0.0)

    # ---- stage 2: intermediate never leaves VMEM ---------------------------
    xp2_ref[:, :, 1:W + 1] = y1.astype(jnp.bfloat16)   # single cast
    xp2_ref[:, :, 0:1] = jnp.zeros((Cout, TH + 2, 1), jnp.bfloat16)
    xp2_ref[:, :, W + 1:W + 2] = jnp.zeros((Cout, TH + 2, 1), jnp.bfloat16)

    x2 = xp2_ref[...]                                  # (Cout, TH+2, W+2)
    p2 = jnp.concatenate(
        [x2[:, dy:dy + TH, dx:dx + W]
         for dy in range(3) for dx in range(3)],
        axis=0).reshape(9 * Cout, TH * W)              # K = 9*Cout
    y2 = jnp.dot(w2_ref[...], p2, preferred_element_type=jnp.float32)
    y2 = jnp.maximum(y2 + b2_ref[...], 0.0)

    # Lane-dense store: last dim TH*W (>=128) -> full-width vst.
    o_ref[0] = y2.astype(o_ref.dtype)


def fold_bn(gamma, beta, mean, var, eps=1e-5):
    scale = gamma / jnp.sqrt(var + eps)
    bias = beta - mean * scale
    return scale, bias


def _im2col_weight(w_hwio, scale):
    """(3,3,Cin,Cout) HWIO * BN scale -> (Cout, 9*Cin) bf16, (dy,dx,cin) order."""
    w = w_hwio * scale[None, None, None, :]
    cout = w.shape[-1]
    return jnp.transpose(w, (3, 0, 1, 2)).reshape(cout, -1).astype(jnp.bfloat16)


def decoder_block(x_nchw, params, row_tile=8):
    """DecoderBlock.forward (eval-mode BN). (N, Cin, H, W) -> (N, Cout, H, W)."""
    N, Cin, H, W = x_nchw.shape
    Cout = params["w1"].shape[-1]

    # Row-tile size: must divide H and keep the output block lane-dense
    # (TH*W % 128 == 0); otherwise fall back to whole-image tiles.
    TH = row_tile
    if not (H % TH == 0 and (TH * W) % 128 == 0 and TH < H):
        TH = H
    T = H // TH

    s1, b1 = fold_bn(params["bn1_gamma"], params["bn1_beta"],
                     params["bn1_mean"], params["bn1_var"])
    s2, b2 = fold_bn(params["bn2_gamma"], params["bn2_beta"],
                     params["bn2_mean"], params["bn2_var"])
    w1m = _im2col_weight(params["w1"], s1)            # (Cout, 9*Cin)  bf16
    w2m = _im2col_weight(params["w2"], s2)            # (Cout, 9*Cout) bf16
    b1 = b1.reshape(Cout, 1).astype(jnp.float32)
    b2 = b2.reshape(Cout, 1).astype(jnp.float32)

    x = x_nchw.astype(jnp.float32)                    # NCHW, no transpose pass

    out_flat = pl.pallas_call(
        decoder_block_kernel,
        out_shape=jax.ShapeDtypeStruct((N, Cout, H * W), jnp.float32),
        grid_spec=pltpu.PrefetchScalarGridSpec(
            num_scalar_prefetch=0,
            grid=(N, T),
            in_specs=[
                # Full image per batch element; constant index map over the
                # row-tile axis -> not re-DMA'd between row tiles.
                pl.BlockSpec((1, Cin, H, W), lambda n, t: (n, 0, 0, 0)),
                # Weights / biases stay VMEM-resident across the whole grid.
                pl.BlockSpec((Cout, 9 * Cin), lambda n, t: (0, 0)),
                pl.BlockSpec((Cout, 1), lambda n, t: (0, 0)),
                pl.BlockSpec((Cout, 9 * Cout), lambda n, t: (0, 0)),
                pl.BlockSpec((Cout, 1), lambda n, t: (0, 0)),
            ],
            out_specs=pl.BlockSpec((1, Cout, TH * W), lambda n, t: (n, 0, t)),
            scratch_shapes=[
                pltpu.VMEM((Cin, H + 4, W + 2), jnp.bfloat16),
                pltpu.VMEM((Cout, TH + 2, W + 2), jnp.bfloat16),
            ],
        ),
        compiler_params=pltpu.CompilerParams(
            dimension_semantics=("parallel", "parallel")),
    )(x, w1m, b1, w2m, b2)

    # (N, Cout, H*W) -> (N, Cout, H, W): pure metadata reshape, no HBM pass.
    return out_flat.reshape(N, Cout, H, W)


def reference_decoder_block(x_nchw, params):
    """Pure-JAX f32 reference (NCHW convs) for the correctness check."""
    def conv_bn_relu(x, w_hwio, scale, bias):
        w_oihw = jnp.transpose(w_hwio, (3, 2, 0, 1))
        y = jax.lax.conv_general_dilated(
            x, w_oihw, window_strides=(1, 1), padding=((1, 1), (1, 1)),
            dimension_numbers=("NCHW", "OIHW", "NCHW"),
            precision=jax.lax.Precision.HIGHEST)
        y = y * scale[None, :, None, None] + bias[None, :, None, None]
        return jnp.maximum(y, 0.0)

    s1, b1 = fold_bn(params["bn1_gamma"], params["bn1_beta"],
                     params["bn1_mean"], params["bn1_var"])
    s2, b2 = fold_bn(params["bn2_gamma"], params["bn2_beta"],
                     params["bn2_mean"], params["bn2_var"])
    y = conv_bn_relu(x_nchw, params["w1"], s1, b1)
    y = conv_bn_relu(y, params["w2"], s2, b2)
    return y


def init_params(key, in_channels, out_channels):
    ks = jax.random.split(key, 8)
    fan1 = in_channels * 9
    fan2 = out_channels * 9
    return {
        # conv weights stored HWIO (3,3,Cin,Cout)
        "w1": jax.random.normal(ks[0], (3, 3, in_channels, out_channels),
                                jnp.float32) / jnp.sqrt(fan1),
        "w2": jax.random.normal(ks[1], (3, 3, out_channels, out_channels),
                                jnp.float32) / jnp.sqrt(fan2),
        # BatchNorm (inference) parameters
        "bn1_gamma": 1.0 + 0.1 * jax.random.normal(ks[2], (out_channels,), jnp.float32),
        "bn1_beta": 0.1 * jax.random.normal(ks[3], (out_channels,), jnp.float32),
        "bn1_mean": 0.05 * jax.random.normal(ks[4], (out_channels,), jnp.float32),
        "bn1_var": 1.0 + 0.1 * jax.random.uniform(ks[5], (out_channels,), jnp.float32),
        "bn2_gamma": 1.0 + 0.1 * jax.random.normal(ks[6], (out_channels,), jnp.float32),
        "bn2_beta": 0.1 * jax.random.normal(ks[7], (out_channels,), jnp.float32),
        "bn2_mean": jnp.zeros((out_channels,), jnp.float32),
        "bn2_var": jnp.ones((out_channels,), jnp.float32),
    }


if __name__ == "__main__":
    key = jax.random.PRNGKey(0)
    k_x, k_p = jax.random.split(key)

    N, C_in, C_out, H, W = 2, 4, 8, 16, 16
    x = jax.random.normal(k_x, (N, C_in, H, W), jnp.float32)
    params = init_params(k_p, C_in, C_out)

    out = jax.block_until_ready(decoder_block(x, params))
    ref = jax.block_until_ready(reference_decoder_block(x, params))

    assert out.shape == (N, C_out, H, W)
    max_err = float(jnp.max(jnp.abs(out - ref)))
    # bf16 matmul operands / bf16 intermediate (f32 accumulation) vs
    # f32-HIGHEST reference -> loosened tolerance.
    assert jnp.allclose(out, ref, atol=5e-2, rtol=5e-2), max_err

    print("KERNEL_OK")
</pallas_src>

<mosaic_0001>
module attributes {stable_mosaic.version = 11 : i64} {
  func.func @decoder_block_kernel(%arg0: i32, %arg1: i32, %arg2: memref<1x4x16x16xf32, #tpu.memory_space<vmem>>, %arg3: memref<8x36xbf16, #tpu.memory_space<vmem>>, %arg4: memref<8x1xf32, #tpu.memory_space<vmem>>, %arg5: memref<8x72xbf16, #tpu.memory_space<vmem>>, %arg6: memref<8x1xf32, #tpu.memory_space<vmem>>, %arg7: memref<1x8x128xf32, #tpu.memory_space<vmem>>, %arg8: memref<4x20x18xbf16, #tpu.memory_space<vmem>>, %arg9: memref<8x10x18xbf16, #tpu.memory_space<vmem>>) attributes {dimension_semantics = [#tpu.dimension_semantics<parallel>, #tpu.dimension_semantics<parallel>], iteration_bounds = array<i64: 2, 2>, scalar_prefetch = 0 : i64, scratch_operands = 2 : i64, tpu.core_type = #tpu.core_type<tc>, window_params = [{transform_indices = @transform_0, window_bounds = array<i64: 1, 4, 16, 16>}, {pipeline_mode = #tpu.pipeline_mode<synchronous>, transform_indices = @transform_1, window_bounds = array<i64: 8, 36>}, {pipeline_mode = #tpu.pipeline_mode<synchronous>, transform_indices = @transform_2, window_bounds = array<i64: 8, 1>}, {pipeline_mode = #tpu.pipeline_mode<synchronous>, transform_indices = @transform_3, window_bounds = array<i64: 8, 72>}, {pipeline_mode = #tpu.pipeline_mode<synchronous>, transform_indices = @transform_4, window_bounds = array<i64: 8, 1>}, {transform_indices = @transform_5, window_bounds = array<i64: 1, 8, 128>}]} {
    %c8_i32 = arith.constant 8 : i32
    %0 = arith.muli %arg1, %c8_i32 : i32
    %1 = tpu.assume_multiple %0, 8 : i32
    %c0 = arith.constant 0 : index
    %c0_0 = arith.constant 0 : index
    %c0_1 = arith.constant 0 : index
    %c0_2 = arith.constant 0 : index
    %2 = vector.load %arg2[%c0, %c0_0, %c0_1, %c0_2] : memref<1x4x16x16xf32, #tpu.memory_space<vmem>>, vector<1x4x16x16xf32>
    %3 = vector.shape_cast %2 : vector<1x4x16x16xf32> to vector<4x16x16xf32>
    %4 = arith.truncf %3 : vector<4x16x16xf32> to vector<4x16x16xbf16>
    %c0_3 = arith.constant 0 : index
    %c2 = arith.constant 2 : index
    %c1 = arith.constant 1 : index
    %5 = vector.load %arg8[%c0_3, %c2, %c1] : memref<4x20x18xbf16, #tpu.memory_space<vmem>>, vector<4x16x16xbf16>
    tpu.vector_store %arg8[%c0_3, %c2, %c1], %4 {strides = array<i32>} : memref<4x20x18xbf16, #tpu.memory_space<vmem>>, vector<4x16x16xbf16>,
    %cst = arith.constant 0.000000e+00 : bf16
    %6 = vector.broadcast %cst : bf16 to vector<4x2x18xbf16>
    %c0_4 = arith.constant 0 : index
    %c0_5 = arith.constant 0 : index
    %c0_6 = arith.constant 0 : index
    %7 = vector.load %arg8[%c0_4, %c0_5, %c0_6] : memref<4x20x18xbf16, #tpu.memory_space<vmem>>, vector<4x2x18xbf16>
    tpu.vector_store %arg8[%c0_4, %c0_5, %c0_6], %6 {strides = array<i32>} : memref<4x20x18xbf16, #tpu.memory_space<vmem>>, vector<4x2x18xbf16>,
    %cst_7 = arith.constant 0.000000e+00 : bf16
    %8 = vector.broadcast %cst_7 : bf16 to vector<4x2x18xbf16>
    %c0_8 = arith.constant 0 : index
    %c18 = arith.constant 18 : index
    %c0_9 = arith.constant 0 : index
    %9 = vector.load %arg8[%c0_8, %c18, %c0_9] : memref<4x20x18xbf16, #tpu.memory_space<vmem>>, vector<4x2x18xbf16>
    tpu.vector_store %arg8[%c0_8, %c18, %c0_9], %8 {strides = array<i32>} : memref<4x20x18xbf16, #tpu.memory_space<vmem>>, vector<4x2x18xbf16>,
    %cst_10 = arith.constant 0.000000e+00 : bf16
    %10 = vector.broadcast %cst_10 : bf16 to vector<4x20x1xbf16>
    %c0_11 = arith.constant 0 : index
    %c0_12 = arith.constant 0 : index
    %c0_13 = arith.constant 0 : index
    %11 = vector.load %arg8[%c0_11, %c0_12, %c0_13] : memref<4x20x18xbf16, #tpu.memory_space<vmem>>, vector<4x20x1xbf16>
    tpu.vector_store %arg8[%c0_11, %c0_12, %c0_13], %10 {strides = array<i32>} : memref<4x20x18xbf16, #tpu.memory_space<vmem>>, vector<4x20x1xbf16>,
    %cst_14 = arith.constant 0.000000e+00 : bf16
    %12 = vector.broadcast %cst_14 : bf16 to vector<4x20x1xbf16>
    %c0_15 = arith.constant 0 : index
    %c0_16 = arith.constant 0 : index
    %c17 = arith.constant 17 : index
    %13 = vector.load %arg8[%c0_15, %c0_16, %c17] : memref<4x20x18xbf16, #tpu.memory_space<vmem>>, vector<4x20x1xbf16>
    tpu.vector_store %arg8[%c0_15, %c0_16, %c17], %12 {strides = array<i32>} : memref<4x20x18xbf16, #tpu.memory_space<vmem>>, vector<4x20x1xbf16>,
    %c0_17 = arith.constant 0 : index
    %14 = arith.index_cast %1 : i32 to index
    %c0_18 = arith.constant 0 : index
    %15 = vector.load %arg8[%c0_17, %14, %c0_18] : memref<4x20x18xbf16, #tpu.memory_space<vmem>>, vector<4x12x18xbf16>
    %16 = vector.extract_strided_slice %15 {offsets = [0, 0, 0], sizes = [4, 10, 16], strides = [1, 1, 1]} : vector<4x12x18xbf16> to vector<4x10x16xbf16>
    %17 = vector.extract_strided_slice %15 {offsets = [0, 0, 1], sizes = [4, 10, 16], strides = [1, 1, 1]} : vector<4x12x18xbf16> to vector<4x10x16xbf16>
    %18 = vector.extract_strided_slice %15 {offsets = [0, 0, 2], sizes = [4, 10, 16], strides = [1, 1, 1]} : vector<4x12x18xbf16> to vector<4x10x16xbf16>
    %19 = vector.extract_strided_slice %15 {offsets = [0, 1, 0], sizes = [4, 10, 16], strides = [1, 1, 1]} : vector<4x12x18xbf16> to vector<4x10x16xbf16>
    %20 = vector.extract_strided_slice %15 {offsets = [0, 1, 1], sizes = [4, 10, 16], strides = [1, 1, 1]} : vector<4x12x18xbf16> to vector<4x10x16xbf16>
    %21 = vector.extract_strided_slice %15 {offsets = [0, 1, 2], sizes = [4, 10, 16], strides = [1, 1, 1]} : vector<4x12x18xbf16> to vector<4x10x16xbf16>
    %22 = vector.extract_strided_slice %15 {offsets = [0, 2, 0], sizes = [4, 10, 16], strides = [1, 1, 1]} : vector<4x12x18xbf16> to vector<4x10x16xbf16>
    %23 = vector.extract_strided_slice %15 {offsets = [0, 2, 1], sizes = [4, 10, 16], strides = [1, 1, 1]} : vector<4x12x18xbf16> to vector<4x10x16xbf16>
    %24 = vector.extract_strided_slice %15 {offsets = [0, 2, 2], sizes = [4, 10, 16], strides = [1, 1, 1]} : vector<4x12x18xbf16> to vector<4x10x16xbf16>
    %25 = tpu.concatenate %16, %17, %18, %19, %20, %21, %22, %23, %24 in 0 : vector<4x10x16xbf16>, vector<4x10x16xbf16>, vector<4x10x16xbf16>, vector<4x10x16xbf16>, vector<4x10x16xbf16>, vector<4x10x16xbf16>, vector<4x10x16xbf16>, vector<4x10x16xbf16>, vector<4x10x16xbf16> -> vector<36x10x16xbf16>
    %26 = vector.shape_cast %25 : vector<36x10x16xbf16> to vector<36x160xbf16>
    %c0_19 = arith.constant 0 : index
    %c0_20 = arith.constant 0 : index
    %27 = vector.load %arg3[%c0_19, %c0_20] : memref<8x36xbf16, #tpu.memory_space<vmem>>, vector<8x36xbf16>
    %cst_21 = arith.constant dense<0.000000e+00> : vector<8x160xf32>
    %28 = tpu.matmul %27, %26, %cst_21 {dimension_numbers = #tpu.dot_dimension_numbers<[1], [0], [0], [1], [0, 0, 1, 1], [], []>} : vector<8x36xbf16>, vector<36x160xbf16>, vector<8x160xf32> -> vector<8x160xf32>
    %c0_22 = arith.constant 0 : index
    %c0_23 = arith.constant 0 : index
    %29 = vector.load %arg4[%c0_22, %c0_23] : memref<8x1xf32, #tpu.memory_space<vmem>>, vector<8x1xf32>
    %30 = vector.broadcast %29 : vector<8x1xf32> to vector<8x160xf32>
    %31 = arith.addf %28, %30 : vector<8x160xf32>
    %cst_24 = arith.constant 0.000000e+00 : f32
    %32 = vector.broadcast %cst_24 : f32 to vector<8x160xf32>
    %33 = arith.maximumf %31, %32 : vector<8x160xf32>
    %34 = vector.shape_cast %33 : vector<8x160xf32> to vector<8x10x16xf32>
    %c1_i32 = arith.constant 1 : i32
    %35 = arith.subi %1, %c1_i32 : i32
    %36 = tpu.iota {dimensions = array<i32: 1>} : vector<1x10x1xi32>
    %37 = vector.broadcast %35 : i32 to vector<1x10x1xi32>
    %38 = arith.addi %37, %36 : vector<1x10x1xi32>
    %c0_i32 = arith.constant 0 : i32
    %39 = vector.broadcast %c0_i32 : i32 to vector<1x10x1xi32>
    %40 = arith.cmpi sge, %38, %39 : vector<1x10x1xi32>
    %c16_i32 = arith.constant 16 : i32
    %41 = vector.broadcast %c16_i32 : i32 to vector<1x10x1xi32>
    %42 = arith.cmpi slt, %38, %41 : vector<1x10x1xi32>
    %43 = arith.andi %40, %42 : vector<1x10x1xi1>
    %cst_25 = arith.constant 0.000000e+00 : f32
    %44 = vector.shape_cast %43 : vector<1x10x1xi1> to vector<1x10x1xi1>
    %45 = vector.broadcast %44 : vector<1x10x1xi1> to vector<8x10x16xi1>
    %46 = vector.broadcast %cst_25 : f32 to vector<8x10x16xf32>
    %47 = arith.select %45, %34, %46 : vector<8x10x16xi1>, vector<8x10x16xf32>
    %48 = arith.truncf %47 : vector<8x10x16xf32> to vector<8x10x16xbf16>
    %c0_26 = arith.constant 0 : index
    %c0_27 = arith.constant 0 : index
    %c1_28 = arith.constant 1 : index
    %49 = vector.load %arg9[%c0_26, %c0_27, %c1_28] : memref<8x10x18xbf16, #tpu.memory_space<vmem>>, vector<8x10x16xbf16>
    tpu.vector_store %arg9[%c0_26, %c0_27, %c1_28], %48 {strides = array<i32>} : memref<8x10x18xbf16, #tpu.memory_space<vmem>>, vector<8x10x16xbf16>,
    %cst_29 = arith.constant 0.000000e+00 : bf16
    %50 = vector.broadcast %cst_29 : bf16 to vector<8x10x1xbf16>
    %c0_30 = arith.constant 0 : index
    %c0_31 = arith.constant 0 : index
    %c0_32 = arith.constant 0 : index
    %51 = vector.load %arg9[%c0_30, %c0_31, %c0_32] : memref<8x10x18xbf16, #tpu.memory_space<vmem>>, vector<8x10x1xbf16>
    tpu.vector_store %arg9[%c0_30, %c0_31, %c0_32], %50 {strides = array<i32>} : memref<8x10x18xbf16, #tpu.memory_space<vmem>>, vector<8x10x1xbf16>,
    %cst_33 = arith.constant 0.000000e+00 : bf16
    %52 = vector.broadcast %cst_33 : bf16 to vector<8x10x1xbf16>
    %c0_34 = arith.constant 0 : index
    %c0_35 = arith.constant 0 : index
    %c17_36 = arith.constant 17 : index
    %53 = vector.load %arg9[%c0_34, %c0_35, %c17_36] : memref<8x10x18xbf16, #tpu.memory_space<vmem>>, vector<8x10x1xbf16>
    tpu.vector_store %arg9[%c0_34, %c0_35, %c17_36], %52 {strides = array<i32>} : memref<8x10x18xbf16, #tpu.memory_space<vmem>>, vector<8x10x1xbf16>,
    %c0_37 = arith.constant 0 : index
    %c0_38 = arith.constant 0 : index
    %c0_39 = arith.constant 0 : index
    %54 = vector.load %arg9[%c0_37, %c0_38, %c0_39] : memref<8x10x18xbf16, #tpu.memory_space<vmem>>, vector<8x10x18xbf16>
    %55 = vector.extract_strided_slice %54 {offsets = [0, 0, 0], sizes = [8, 8, 16], strides = [1, 1, 1]} : vector<8x10x18xbf16> to vector<8x8x16xbf16>
    %56 = vector.extract_strided_slice %54 {offsets = [0, 0, 1], sizes = [8, 8, 16], strides = [1, 1, 1]} : vector<8x10x18xbf16> to vector<8x8x16xbf16>
    %57 = vector.extract_strided_slice %54 {offsets = [0, 0, 2], sizes = [8, 8, 16], strides = [1, 1, 1]} : vector<8x10x18xbf16> to vector<8x8x16xbf16>
    %58 = vector.extract_strided_slice %54 {offsets = [0, 1, 0], sizes = [8, 8, 16], strides = [1, 1, 1]} : vector<8x10x18xbf16> to vector<8x8x16xbf16>
    %59 = vector.extract_strided_slice %54 {offsets = [0, 1, 1], sizes = [8, 8, 16], strides = [1, 1, 1]} : vector<8x10x18xbf16> to vector<8x8x16xbf16>
    %60 = vector.extract_strided_slice %54 {offsets = [0, 1, 2], sizes = [8, 8, 16], strides = [1, 1, 1]} : vector<8x10x18xbf16> to vector<8x8x16xbf16>
    %61 = vector.extract_strided_slice %54 {offsets = [0, 2, 0], sizes = [8, 8, 16], strides = [1, 1, 1]} : vector<8x10x18xbf16> to vector<8x8x16xbf16>
    %62 = vector.extract_strided_slice %54 {offsets = [0, 2, 1], sizes = [8, 8, 16], strides = [1, 1, 1]} : vector<8x10x18xbf16> to vector<8x8x16xbf16>
    %63 = vector.extract_strided_slice %54 {offsets = [0, 2, 2], sizes = [8, 8, 16], strides = [1, 1, 1]} : vector<8x10x18xbf16> to vector<8x8x16xbf16>
    %64 = tpu.concatenate %55, %56, %57, %58, %59, %60, %61, %62, %63 in 0 : vector<8x8x16xbf16>, vector<8x8x16xbf16>, vector<8x8x16xbf16>, vector<8x8x16xbf16>, vector<8x8x16xbf16>, vector<8x8x16xbf16>, vector<8x8x16xbf16>, vector<8x8x16xbf16>, vector<8x8x16xbf16> -> vector<72x8x16xbf16>
    %65 = vector.shape_cast %64 : vector<72x8x16xbf16> to vector<72x128xbf16>
    %c0_40 = arith.constant 0 : index
    %c0_41 = arith.constant 0 : index
    %66 = vector.load %arg5[%c0_40, %c0_41] : memref<8x72xbf16, #tpu.memory_space<vmem>>, vector<8x72xbf16>
    %cst_42 = arith.constant dense<0.000000e+00> : vector<8x128xf32>
    %67 = tpu.matmul %66, %65, %cst_42 {dimension_numbers = #tpu.dot_dimension_numbers<[1], [0], [0], [1], [0, 0, 1, 1], [], []>} : vector<8x72xbf16>, vector<72x128xbf16>, vector<8x128xf32> -> vector<8x128xf32>
    %c0_43 = arith.constant 0 : index
    %c0_44 = arith.constant 0 : index
    %68 = vector.load %arg6[%c0_43, %c0_44] : memref<8x1xf32, #tpu.memory_space<vmem>>, vector<8x1xf32>
    %69 = vector.broadcast %68 : vector<8x1xf32> to vector<8x128xf32>
    %70 = arith.addf %67, %69 : vector<8x128xf32>
    %cst_45 = arith.constant 0.000000e+00 : f32
    %71 = vector.broadcast %cst_45 : f32 to vector<8x128xf32>
    %72 = arith.maximumf %70, %71 : vector<8x128xf32>
    %c0_46 = arith.constant 0 : index
    %c0_47 = arith.constant 0 : index
    %c0_48 = arith.constant 0 : index
    %73 = vector.load %arg7[%c0_46, %c0_47, %c0_48] : memref<1x8x128xf32, #tpu.memory_space<vmem>>, vector<1x8x128xf32>
    %74 = vector.shape_cast %73 : vector<1x8x128xf32> to vector<8x128xf32>
    %75 = vector.shape_cast %72 : vector<8x128xf32> to vector<1x8x128xf32>
    tpu.vector_store %arg7[%c0_46, %c0_47, %c0_48], %75 {strides = array<i32>} : memref<1x8x128xf32, #tpu.memory_space<vmem>>, vector<1x8x128xf32>,
    return
  }
  func.func @transform_0(%arg0: i32, %arg1: i32) -> (i32, i32, i32, i32) {
    %c0_i32 = arith.constant 0 : i32
    %c0_i32_0 = arith.constant 0 : i32
    %c0_i32_1 = arith.constant 0 : i32
    %c0_i32_2 = arith.constant 0 : i32
    return %arg0, %c0_i32, %c0_i32_0, %c0_i32_1 : i32, i32, i32, i32
  }
  func.func @transform_1(%arg0: i32, %arg1: i32) -> (i32, i32) {
    %c0_i32 = arith.constant 0 : i32
    %c0_i32_0 = arith.constant 0 : i32
    %c0_i32_1 = arith.constant 0 : i32
    return %c0_i32, %c0_i32_0 : i32, i32
  }
  func.func @transform_2(%arg0: i32, %arg1: i32) -> (i32, i32) {
    %c0_i32 = arith.constant 0 : i32
    %c0_i32_0 = arith.constant 0 : i32
    %c0_i32_1 = arith.constant 0 : i32
    return %c0_i32, %c0_i32_0 : i32, i32
  }
  func.func @transform_3(%arg0: i32, %arg1: i32) -> (i32, i32) {
    %c0_i32 = arith.constant 0 : i32
    %c0_i32_0 = arith.constant 0 : i32
    %c0_i32_1 = arith.constant 0 : i32
    return %c0_i32, %c0_i32_0 : i32, i32
  }
  func.func @transform_4(%arg0: i32, %arg1: i32) -> (i32, i32) {
    %c0_i32 = arith.constant 0 : i32
    %c0_i32_0 = arith.constant 0 : i32
    %c0_i32_1 = arith.constant 0 : i32
    return %c0_i32, %c0_i32_0 : i32, i32
  }
  func.func @transform_5(%arg0: i32, %arg1: i32) -> (i32, i32, i32) {
    %c0_i32 = arith.constant 0 : i32
    %c0_i32_0 = arith.constant 0 : i32
    return %arg0, %c0_i32, %arg1 : i32, i32, i32
  }
}

</mosaic_0001>

<llo_original>
// kernel: tpu_custom_call.1
$region0: #{tpu_custom_call.1}
  #allocation0 [shape = 'u32[]', space=smem, size = 0x4, offset = 0x4, fixed_abs, tag = 'smem constant byte address 0x4 - core index']
  #allocation1 [shape = 'u32[144,128]{1,0:T(1,128)}', space=vmem, size = 0x12000, scoped, tag = 'internal scratch']
  #allocation2 [shape = 'bf16[4,20,18]{2,1,0:T(8,128)(2,1)}', space=vmem, size = 0x6000, scoped, tag = 'scratch operand']
  #allocation3 [shape = 'bf16[8,10,18]{2,1,0:T(8,128)(2,1)}', space=vmem, size = 0x8000, scoped, tag = 'scratch operand']
  %s0 = inlined_call_operand.hbm [shape: f32[2,4,16,16], index: 0, kind: input, shape index: {}]
  %s1 = inlined_call_operand.vmem [shape: bf16[8,36], index: 1, kind: input, shape index: {}]
  %s2 = inlined_call_operand.vmem [shape: f32[8,1], index: 2, kind: input, shape index: {}]
  %s3 = inlined_call_operand.vmem [shape: bf16[8,72], index: 3, kind: input, shape index: {}]
  %s4 = inlined_call_operand.vmem [shape: f32[8,1], index: 4, kind: input, shape index: {}]
  %s5 = inlined_call_operand.hbm [shape: f32[2,8,256], index: 5, kind: output, shape index: {}]
  %s6 = sld [smem:[#allocation0]]
  $region57: #{tpu_custom_call.1} parent=0
    _
  %s8 = ssub.s32 1, %s6
  %s9 = scalar_select 0, %s8, %s6
  $region1: #{tpu_custom_call.1} parent=0
    #allocation4 [shape = 'u8[65536]{0}', space=vmem, size = 0x10000, scoped, tag = 'input window, operand 0']
    #allocation5 [shape = 's32[2]{0}', space=sflag, size = 0x8, scoped, tag = 'scoped memory for tpu_custom_call.1']
    #allocation6 [shape = 's32[2]{0}', space=sflag, size = 0x8, scoped, tag = 'scoped memory for tpu_custom_call.1']
    #allocation7 [shape = 'u8[8192]{0}', space=vmem, size = 0x2000, scoped, tag = 'output window, operand 0']
    %10 = vsyncpa [#allocation5], 0
    %s11 = scalar_lea.sflag [#allocation5], 1
    %12 = vsyncpa %s11, 0
    %13 = vsyncpa [#allocation6], 0
    %s14 = scalar_lea.sflag [#allocation6], 1
    %15 = vsyncpa %s14, 0
    loop: start=0, step=1, limit=6
    $region2: #{tpu_custom_call.1} parent=1 // loop_pre_header
      _
    $region3: #{tpu_custom_call.1} parent=1 // loop_header
      %s17 = sphi 0, %s21
      %p18 = scmp.ge.s32.totalorder %s17, 6
      %s24 = sphi 0, %s36
      %s25 = sphi 0, %s32
      %s26 = sphi 0, %s24
      %s27 = sphi 0, %s25
      %s28 = sphi 0, %s26
      %s29 = sphi 0, %s27
      %s39 = sphi 0, %s41
      %s42 = sphi 0, %s39
      %s43 = sphi 0, %s42
      %s59 = sphi 0, %s43
      %s63 = sphi 0, %s63
      %s65 = sphi 0, %s63
      %s66 = sphi 0, %s65
      %s80 = sphi 0, %s66
      %s84 = sphi 0, %s84
      %s86 = sphi 0, %s84
      %s87 = sphi 0, %s86
      %s101 = sphi 0, %s87
      %s105 = sphi 0, %s105
      %s107 = sphi 0, %s105
      %s108 = sphi 0, %s107
      %s122 = sphi 0, %s108
      %s126 = sphi 0, %s126
      %s128 = sphi 0, %s126
      %s129 = sphi 0, %s128
      %s143 = sphi 0, %s129
      %s151 = sphi 0, %s153
      %s154 = sphi 0, %s151
      %s155 = sphi 0, %s154
      %s171 = sphi 0, %s155
    $region4: #{tpu_custom_call.1} parent=1 // loop_header_branch
      %20 = sbr.rel (%p18) target = $region8
    $region5: #{tpu_custom_call.1} parent=1 // loop_body
      %s22 = ssub.s32 %s17, 1
      %s23 = ssub.s32 %s17, 2
      %s30 = sadd.s32 1, %s25
      %p31 = scmp.ge.s32.totalorder %s30, 2
      %s32 = scalar_select %p31, 0, %s30
      %s33 = sadd.s32 1, %s24
      %s34 = scalar_select %p31, %s33, %s24
      %p35 = scmp.ge.s32.totalorder %s34, 2
      %s36 = scalar_select %p35, 0, %s34
      %s37 = ssub.s32 %s24, %s36
      %p38 = scmp.eq.s32.totalorder %s37, 0
      %s40 = sadd.s32 %s39, 1
      %s41 = scalar_select %p38, %s39, %s40
      %p44 = pneg %p38
      %p45 = scmp.eq.s32.totalorder %s17, 3
      %p46 = por %p44, %p45
      %p47 = scmp.ne.s32.totalorder %s39, %s42
      %p48 = scmp.eq.s32.totalorder %s17, 0
      %p49 = por %p47, %p48
      %p50 = scmp.ne.s32.totalorder %s39, %s42
      %p51 = scmp.eq.s32.totalorder %s22, 3
      %p52 = por %p50, %p51
      %p53 = scmp.ne.s32.totalorder %s42, %s43
      %p54 = scmp.eq.s32.totalorder %s22, 0
      %p55 = por %p53, %p54
      %p56 = scmp.ne.s32.totalorder %s42, %s43
      %p57 = scmp.eq.s32.totalorder %s23, 3
      %p58 = por %p56, %p57
      %p60 = scmp.ne.s32.totalorder %s43, %s59
      %p61 = scmp.eq.s32.totalorder %s23, 0
      %p62 = por %p60, %p61
      %s64 = sadd.s32 %s63, 1
      %p67 = scmp.eq.s32.totalorder %s17, 3
      %p68 = scmp.ne.s32.totalorder %s63, %s65
      %p69 = scmp.eq.s32.totalorder %s17, 0
      %p70 = por %p68, %p69
      %p71 = scmp.ne.s32.totalorder %s63, %s65
      %p72 = scmp.eq.s32.totalorder %s22, 3
      %p73 = por %p71, %p72
      %p74 = scmp.ne.s32.totalorder %s65, %s66
      %p75 = scmp.eq.s32.totalorder %s22, 0
      %p76 = por %p74, %p75
      %p77 = scmp.ne.s32.totalorder %s65, %s66
      %p78 = scmp.eq.s32.totalorder %s23, 3
      %p79 = por %p77, %p78
      %p81 = scmp.ne.s32.totalorder %s66, %s80
      %p82 = scmp.eq.s32.totalorder %s23, 0
      %p83 = por %p81, %p82
      %s85 = sadd.s32 %s84, 1
      %p88 = scmp.eq.s32.totalorder %s17, 3
      %p89 = scmp.ne.s32.totalorder %s84, %s86
      %p90 = scmp.eq.s32.totalorder %s17, 0
      %p91 = por %p89, %p90
      %p92 = scmp.ne.s32.totalorder %s84, %s86
      %p93 = scmp.eq.s32.totalorder %s22, 3
      %p94 = por %p92, %p93
      %p95 = scmp.ne.s32.totalorder %s86, %s87
      %p96 = scmp.eq.s32.totalorder %s22, 0
      %p97 = por %p95, %p96
      %p98 = scmp.ne.s32.totalorder %s86, %s87
      %p99 = scmp.eq.s32.totalorder %s23, 3
      %p100 = por %p98, %p99
      %p102 = scmp.ne.s32.totalorder %s87, %s101
      %p103 = scmp.eq.s32.totalorder %s23, 0
      %p104 = por %p102, %p103
      %s106 = sadd.s32 %s105, 1
      %p109 = scmp.eq.s32.totalorder %s17, 3
      %p110 = scmp.ne.s32.totalorder %s105, %s107
      %p111 = scmp.eq.s32.totalorder %s17, 0
      %p112 = por %p110, %p111
      %p113 = scmp.ne.s32.totalorder %s105, %s107
      %p114 = scmp.eq.s32.totalorder %s22, 3
      %p115 = por %p113, %p114
      %p116 = scmp.ne.s32.totalorder %s107, %s108
      %p117 = scmp.eq.s32.totalorder %s22, 0
      %p118 = por %p116, %p117
      %p119 = scmp.ne.s32.totalorder %s107, %s108
      %p120 = scmp.eq.s32.totalorder %s23, 3
      %p121 = por %p119, %p120
      %p123 = scmp.ne.s32.totalorder %s108, %s122
      %p124 = scmp.eq.s32.totalorder %s23, 0
      %p125 = por %p123, %p124
      %s127 = sadd.s32 %s126, 1
      %p130 = scmp.eq.s32.totalorder %s17, 3
      %p131 = scmp.ne.s32.totalorder %s126, %s128
      %p132 = scmp.eq.s32.totalorder %s17, 0
      %p133 = por %p131, %p132
      %p134 = scmp.ne.s32.totalorder %s126, %s128
      %p135 = scmp.eq.s32.totalorder %s22, 3
      %p136 = por %p134, %p135
      %p137 = scmp.ne.s32.totalorder %s128, %s129
      %p138 = scmp.eq.s32.totalorder %s22, 0
      %p139 = por %p137, %p138
      %p140 = scmp.ne.s32.totalorder %s128, %s129
      %p141 = scmp.eq.s32.totalorder %s23, 3
      %p142 = por %p140, %p141
      %p144 = scmp.ne.s32.totalorder %s129, %s143
      %p145 = scmp.eq.s32.totalorder %s23, 0
      %p146 = por %p144, %p145
      %s147 = ssub.s32 %s24, %s36
      %s148 = ssub.s32 %s25, %s32
      %s149 = sor.u32 %s147, %s148
      %p150 = scmp.eq.s32.totalorder %s149, 0
      %s152 = sadd.s32 %s151, 1
      %s153 = scalar_select %p150, %s151, %s152
      %p156 = pneg %p150
      %p157 = scmp.eq.s32.totalorder %s17, 3
      %p158 = por %p156, %p157
      %p159 = scmp.ne.s32.totalorder %s151, %s154
      %p160 = scmp.eq.s32.totalorder %s17, 0
      %p161 = por %p159, %p160
      %p162 = scmp.ne.s32.totalorder %s151, %s154
      %p163 = scmp.eq.s32.totalorder %s22, 3
      %p164 = por %p162, %p163
      %p165 = scmp.ne.s32.totalorder %s154, %s155
      %p166 = scmp.eq.s32.totalorder %s22, 0
      %p167 = por %p165, %p166
      %p168 = scmp.ne.s32.totalorder %s154, %s155
      %p169 = scmp.eq.s32.totalorder %s23, 3
      %p170 = por %p168, %p169
      %p172 = scmp.ne.s32.totalorder %s155, %s171
      %p173 = scmp.eq.s32.totalorder %s23, 0
      %p174 = por %p172, %p173
      %p175 = scmp.le.s32.totalorder 1, %s17
      %p176 = scmp.lt.s32.totalorder %s17, 5
      %p177 = pnand %p175, %p176
      %p178 = pneg %p177
      // Predicated region
      $region9: #{tpu_custom_call.1} parent=5 // pred_check
        _
      $region10: #{tpu_custom_call.1} parent=5 // pred_check_branch
        %180 = sbr.rel (%p177) target = $region12
      $region11: #{tpu_custom_call.1} parent=5 // pred_region
        %s181 = ssub.s32 %s17, 1
        // Predicated region
        $region13: #{tpu_custom_call.1} parent=11 // pred_check
          %p182 = pneg %p76
        $region14: #{tpu_custom_call.1} parent=11 // pred_check_branch
          %184 = sbr.rel (%p182) target = $region16
        $region15: #{tpu_custom_call.1} parent=11 // pred_region
          _
        $region16: #{tpu_custom_call.1} parent=11 // pred_fallthru
          _
        // Predicated region
        $region17: #{tpu_custom_call.1} parent=11 // pred_check
          %p185 = pneg %p97
        $region18: #{tpu_custom_call.1} parent=11 // pred_check_branch
          %187 = sbr.rel (%p185) target = $region20
        $region19: #{tpu_custom_call.1} parent=11 // pred_region
          _
        $region20: #{tpu_custom_call.1} parent=11 // pred_fallthru
          _
        // Predicated region
        $region21: #{tpu_custom_call.1} parent=11 // pred_check
          %p188 = pneg %p118
        $region22: #{tpu_custom_call.1} parent=11 // pred_check_branch
          %190 = sbr.rel (%p188) target = $region24
        $region23: #{tpu_custom_call.1} parent=11 // pred_region
          _
        $region24: #{tpu_custom_call.1} parent=11 // pred_fallthru
          _
        // Predicated region
        $region25: #{tpu_custom_call.1} parent=11 // pred_check
          %p191 = pneg %p139
        $region26: #{tpu_custom_call.1} parent=11 // pred_check_branch
          %193 = sbr.rel (%p191) target = $region28
        $region27: #{tpu_custom_call.1} parent=11 // pred_region
          _
        $region28: #{tpu_custom_call.1} parent=11 // pred_fallthru
          _
      $region12: #{tpu_custom_call.1} parent=5 // pred_fallthru
        _
      %p194 = scmp.lt.s32.totalorder %s17, 4
      // Predicated region
      $region29: #{tpu_custom_call.1} parent=5 // pred_check
        %p195 = pneg %p194
      $region30: #{tpu_custom_call.1} parent=5 // pred_check_branch
        %197 = sbr.rel (%p195) target = $region32
      $region31: #{tpu_custom_call.1} parent=5 // pred_region
        // Predicated region
        $region33: #{tpu_custom_call.1} parent=31 // pred_check
          %p198 = pneg %p49
        $region34: #{tpu_custom_call.1} parent=31 // pred_check_branch
          %200 = sbr.rel (%p198) target = $region36
        $region35: #{tpu_custom_call.1} parent=31 // pred_region
          %s201 = sand.u32 %s39, 1
          %s202 = scalar_lea.sflag [#allocation5], %s201
          %s203 = sand.u32 %s39, 1
          %s204 = smul.addr %s203, 64
          %s205 = scalar_lea.vmem [#allocation4], %s204
          %s207 = ssub.s32 1024, 1024
          %208 = vsyncadd %s202, %s207
          %s209 = smul.addr %s24, 8
          %s210 = smul.addr %s209, 128
          %s211 = scalar_lea.hbm %s0, %s210
          %s212 = sshll.u32 %s205, 4
          %s213 = int_to_ptr.vmem [resolvable:$true] %s212
          %218 = dma.hbm_to_vmem [thread:$0]  %s211, 1024, %s213, %s202, 128, 128, 8
        $region36: #{tpu_custom_call.1} parent=31 // pred_fallthru
          _
      $region32: #{tpu_custom_call.1} parent=5 // pred_fallthru
        _
      %p219 = scmp.le.s32.totalorder 1, %s17
      %p220 = scmp.lt.s32.totalorder %s17, 5
      %p221 = pnand %p219, %p220
      %p222 = pneg %p221
      // Predicated region
      $region37: #{tpu_custom_call.1} parent=5 // pred_check
        _
      $region38: #{tpu_custom_call.1} parent=5 // pred_check_branch
        %224 = sbr.rel (%p221) target = $region40
      $region39: #{tpu_custom_call.1} parent=5 // pred_region
        %s225 = ssub.s32 %s17, 1
        %s226 = sand.u32 %s42, 1
        %s227 = scalar_lea.sflag [#allocation5], %s226
        %s228 = sand.u32 %s42, 1
        %s229 = smul.addr %s228, 64
        %s230 = scalar_lea.vmem [#allocation4], %s229
        // Predicated region
        $region41: #{tpu_custom_call.1} parent=39 // pred_check
          %p231 = pneg %p55
        $region42: #{tpu_custom_call.1} parent=39 // pred_check_branch
          %233 = sbr.rel (%p231) target = $region44
        $region43: #{tpu_custom_call.1} parent=39 // pred_region
          %234 = dma.done %s227, 1024
        $region44: #{tpu_custom_call.1} parent=39 // pred_fallthru
          _
        %s235 = sand.u32 %s42, 1
        %s236 = scalar_lea.sflag [#allocation5], %s235
        %s237 = sand.u32 %s42, 1
        %s238 = smul.addr %s237, 64
        %s239 = scalar_lea.vmem [#allocation4], %s238
        %p240 = pneg %p55
        %p241 = pneg %p52
        %p242 = pneg %p76
        %p243 = pneg %p73
        %p244 = pneg %p97
        %p245 = pneg %p94
        %p246 = pneg %p118
        %p247 = pneg %p115
        %p248 = pneg %p139
        %p249 = pneg %p136
        %p250 = pneg %p167
        %p251 = pneg %p164
        %s252 = sand.u32 %s154, 1
        %s253 = scalar_lea.sflag [#allocation6], %s252
        %s254 = sand.u32 %s154, 1
        %s255 = smul.addr %s254, 8
        %s256 = scalar_lea.vmem [#allocation7], %s255
        %s258 = smul.u32 %s27, 8
        %v259 = vld [vmem:[%s230] sm:$0xff]
        %v260 = vld [vmem:[%s230 + $0x8] sm:$0xff]
        %v261 = vld [vmem:[%s230 + $0x10] sm:$0xff]
        %v262 = vld [vmem:[%s230 + $0x18] sm:$0xff]
        %v263 = vld [vmem:[%s230 + $0x20] sm:$0xff]
        %v264 = vld [vmem:[%s230 + $0x28] sm:$0xff]
        %v265 = vld [vmem:[%s230 + $0x30] sm:$0xff]
        %v266 = vld [vmem:[%s230 + $0x38] sm:$0xff]
        %v267 = vpack.c.bf16 %v260, %v259
        %v268 = vpack.c.bf16 %v262, %v261
        %v269 = vpack.c.bf16 %v264, %v263
        %v270 = vpack.c.bf16 %v266, %v265
        %v275 = vunpack.c.l.b16 %v267
        %v276 = vunpack.c.h.b16 %v267
        %v277 = vunpack.c.l.b16 %v268
        %v278 = vunpack.c.h.b16 %v268
        %v279 = vunpack.c.l.b16 %v269
        %v280 = vunpack.c.h.b16 %v269
        %v281 = vunpack.c.l.b16 %v270
        %v282 = vunpack.c.h.b16 %v270
        %v283 = vpack.c.b16 %v275, %v275
        %v284 = vpack.c.b16 %v276, %v276
        %v285 = vpack.c.b16 %v277, %v277
        %v286 = vpack.c.b16 %v278, %v278
        %v287 = vpack.c.b16 %v279, %v279
        %v288 = vpack.c.b16 %v280, %v280
        %v289 = vpack.c.b16 %v281, %v281
        %v290 = vpack.c.b16 %v282, %v282
        %vm291 = vcmask 1040384
        %vm292 = vcmask 1044484
        %vm293 = vmor %vm291, %vm292
        %v294 = vrot.slane %v283, 7
        %v295 = vrot.slane %v294, 4
        %v296 = vrot.slane %v284, 7
        %v297 = vsel %vm293, %v295, %v296
        %v298 = vrot.slane %v296, 4
        %v299 = vrot.slane %v285, 7
        %v300 = vrot.slane %v299, 4
        %v301 = vrot.slane %v286, 7
        %v302 = vsel %vm293, %v300, %v301
        %v303 = vrot.slane %v301, 4
        %v304 = vrot.slane %v287, 7
        %v305 = vrot.slane %v304, 4
        %v306 = vrot.slane %v288, 7
        %v307 = vsel %vm293, %v305, %v306
        %v308 = vrot.slane %v306, 4
        %v309 = vrot.slane %v289, 7
        %v310 = vrot.slane %v309, 4
        %v311 = vrot.slane %v290, 7
        %v312 = vsel %vm293, %v310, %v311
        %v313 = vrot.slane %v311, 4
        %314 = vrot.lane.b32.xlu0 %v294, 1
        %v315 = vpop.permute.xlu0 %314
        %316 = vrot.lane.b32.xlu0 %v297, 1
        %v317 = vpop.permute.xlu0 %316
        %318 = vrot.lane.b32.xlu0 %v298, 1
        %v319 = vpop.permute.xlu0 %318
        %320 = vrot.lane.b32.xlu0 %v299, 1
        %v321 = vpop.permute.xlu0 %320
        %322 = vrot.lane.b32.xlu0 %v302, 1
        %v323 = vpop.permute.xlu0 %322
        %324 = vrot.lane.b32.xlu0 %v303, 1
        %v325 = vpop.permute.xlu0 %324
        %326 = vrot.lane.b32.xlu0 %v304, 1
        %v327 = vpop.permute.xlu0 %326
        %328 = vrot.lane.b32.xlu0 %v307, 1
        %v329 = vpop.permute.xlu0 %328
        %330 = vrot.lane.b32.xlu0 %v308, 1
        %v331 = vpop.permute.xlu0 %330
        %332 = vrot.lane.b32.xlu0 %v309, 1
        %v333 = vpop.permute.xlu0 %332
        %334 = vrot.lane.b32.xlu0 %v312, 1
        %v335 = vpop.permute.xlu0 %334
        %336 = vrot.lane.b32.xlu0 %v313, 1
        %v337 = vpop.permute.xlu0 %336
        %vm350 = vcmask 134153
        %351 = vst.msk [vmem:[#allocation2] sm:$0xe] %vm350, %v315
        %vm352 = vcmask 134152
        %353 = vst.msk [vmem:[#allocation2 + $0x4] sm:$0xf] %vm352, %v317
        %vm354 = vcmask 131080
        %355 = vst.msk [vmem:[#allocation2 + $0x8] sm:$0x1] %vm354, %v319
        %356 = vst.msk [vmem:[#allocation2 + $0xc] sm:$0xe] %vm350, %v321
        %357 = vst.msk [vmem:[#allocation2 + $0x10] sm:$0xf] %vm352, %v323
        %358 = vst.msk [vmem:[#allocation2 + $0x14] sm:$0x1] %vm354, %v325
        %359 = vst.msk [vmem:[#allocation2 + $0x18] sm:$0xe] %vm350, %v327
        %360 = vst.msk [vmem:[#allocation2 + $0x1c] sm:$0xf] %vm352, %v329
        %361 = vst.msk [vmem:[#allocation2 + $0x20] sm:$0x1] %vm354, %v331
        %362 = vst.msk [vmem:[#allocation2 + $0x24] sm:$0xe] %vm350, %v333
        %363 = vst.msk [vmem:[#allocation2 + $0x28] sm:$0xf] %vm352, %v335
        %364 = vst.msk [vmem:[#allocation2 + $0x2c] sm:$0x1] %vm354, %v337
        %vm365 = vcmask 139264
        %366 = vst.msk [vmem:[#allocation2] sm:$0x1] %vm365, 0
        %367 = vst.msk [vmem:[#allocation2 + $0xc] sm:$0x1] %vm365, 0
        %368 = vst.msk [vmem:[#allocation2 + $0x18] sm:$0x1] %vm365, 0
        %369 = vst.msk [vmem:[#allocation2 + $0x24] sm:$0x1] %vm365, 0
        %vm370 = vcmask 140289
        %371 = vst.msk [vmem:[#allocation2 + $0x8] sm:$0x2] %vm370, 0
        %372 = vst.msk [vmem:[#allocation2 + $0x14] sm:$0x2] %vm370, 0
        %373 = vst.msk [vmem:[#allocation2 + $0x20] sm:$0x2] %vm370, 0
        %374 = vst.msk [vmem:[#allocation2 + $0x2c] sm:$0x2] %vm370, 0
        %vm375 = vcmask 3072
        %376 = vst.msk [vmem:[#allocation2] sm:$0xf] %vm375, 0
        %377 = vst.msk [vmem:[#allocation2 + $0x4] sm:$0xf] %vm375, 0
        %vm378 = vcmask 1024
        %379 = vst.msk [vmem:[#allocation2 + $0x8] sm:$0x3] %vm378, 0
        %380 = vst.msk [vmem:[#allocation2 + $0xc] sm:$0xf] %vm375, 0
        %381 = vst.msk [vmem:[#allocation2 + $0x10] sm:$0xf] %vm375, 0
        %382 = vst.msk [vmem:[#allocation2 + $0x14] sm:$0x3] %vm378, 0
        %383 = vst.msk [vmem:[#allocation2 + $0x18] sm:$0xf] %vm375, 0
        %384 = vst.msk [vmem:[#allocation2 + $0x1c] sm:$0xf] %vm375, 0
        %385 = vst.msk [vmem:[#allocation2 + $0x20] sm:$0x3] %vm378, 0
        %386 = vst.msk [vmem:[#allocation2 + $0x24] sm:$0xf] %vm375, 0
        %387 = vst.msk [vmem:[#allocation2 + $0x28] sm:$0xf] %vm375, 0
        %388 = vst.msk [vmem:[#allocation2 + $0x2c] sm:$0x3] %vm378, 0
        %vm389 = vcmask 142472
        %390 = vst.msk [vmem:[#allocation2] sm:$0xf] %vm389, 0
        %391 = vst.msk [vmem:[#allocation2 + $0x4] sm:$0xf] %vm389, 0
        %vm392 = vcmask 140424
        %393 = vst.msk [vmem:[#allocation2 + $0x8] sm:$0x3] %vm392, 0
        %394 = vst.msk [vmem:[#allocation2 + $0xc] sm:$0xf] %vm389, 0
        %395 = vst.msk [vmem:[#allocation2 + $0x10] sm:$0xf] %vm389, 0
        %396 = vst.msk [vmem:[#allocation2 + $0x14] sm:$0x3] %vm392, 0
        %397 = vst.msk [vmem:[#allocation2 + $0x18] sm:$0xf] %vm389, 0
        %398 = vst.msk [vmem:[#allocation2 + $0x1c] sm:$0xf] %vm389, 0
        %399 = vst.msk [vmem:[#allocation2 + $0x20] sm:$0x3] %vm392, 0
        %400 = vst.msk [vmem:[#allocation2 + $0x24] sm:$0xf] %vm389, 0
        %401 = vst.msk [vmem:[#allocation2 + $0x28] sm:$0xf] %vm389, 0
        %402 = vst.msk [vmem:[#allocation2 + $0x2c] sm:$0x3] %vm392, 0
        %s403 = sshra.s32 %s258, 3
        %s404 = sand.u32 %s258, 7
        %s405 = smul.addr %s403, 4
        %s406 = scalar_lea.vmem [#allocation2], %s405
        %v407 = vld [vmem:[%s406] sm:$0xf]
        %v408 = vld [vmem:[%s406 + $0x4] sm:$0x3]
        %v409 = vld [vmem:[%s406 + $0xc] sm:$0xf]
        %v410 = vld [vmem:[%s406 + $0x10] sm:$0x3]
        %v411 = vld [vmem:[%s406 + $0x18] sm:$0xf]
        %v412 = vld [vmem:[%s406 + $0x1c] sm:$0x3]
        %v413 = vld [vmem:[%s406 + $0x24] sm:$0xf]
        %v414 = vld [vmem:[%s406 + $0x28] sm:$0x3]
        %423 = vrot.lane.b32.xlu0 %v407, 127
        %v424 = vpop.permute.xlu0 %423
        %425 = vrot.lane.b32.xlu0 %v408, 127
        %v426 = vpop.permute.xlu0 %425
        %427 = vrot.lane.b32.xlu0 %v409, 127
        %v428 = vpop.permute.xlu0 %427
        %429 = vrot.lane.b32.xlu0 %v410, 127
        %v430 = vpop.permute.xlu0 %429
        %431 = vrot.lane.b32.xlu0 %v411, 127
        %v432 = vpop.permute.xlu0 %431
        %433 = vrot.lane.b32.xlu0 %v412, 127
        %v434 = vpop.permute.xlu0 %433
        %435 = vrot.lane.b32.xlu0 %v413, 127
        %v436 = vpop.permute.xlu0 %435
        %437 = vrot.lane.b32.xlu0 %v414, 127
        %v438 = vpop.permute.xlu0 %437
        %447 = vrot.lane.b32.xlu0 %v407, 126
        %v448 = vpop.permute.xlu0 %447
        %449 = vrot.lane.b32.xlu0 %v408, 126
        %v450 = vpop.permute.xlu0 %449
        %451 = vrot.lane.b32.xlu0 %v409, 126
        %v452 = vpop.permute.xlu0 %451
        %453 = vrot.lane.b32.xlu0 %v410, 126
        %v454 = vpop.permute.xlu0 %453
        %455 = vrot.lane.b32.xlu0 %v411, 126
        %v456 = vpop.permute.xlu0 %455
        %457 = vrot.lane.b32.xlu0 %v412, 126
        %v458 = vpop.permute.xlu0 %457
        %459 = vrot.lane.b32.xlu0 %v413, 126
        %v460 = vpop.permute.xlu0 %459
        %461 = vrot.lane.b32.xlu0 %v414, 126
        %v462 = vpop.permute.xlu0 %461
        %vm471 = vsmask.f32 3328
        %vm472 = vsmask.f32 7440
        %vm473 = vmor %vm471, %vm472
        %v475 = vshrl.u32 %v407, 16
        %v477 = vrot.slane %v475, 4
        %v478 = vshll.u32 %v407, 16
        %v480 = vrot.slane %v478, 5
        %v481 = vor.u32 %v477, %v480
        %v482 = vrot.slane %v481, 4
        %v484 = vshll.u32 %v408, 16
        %v486 = vrot.slane %v484, 5
        %v487 = vsel %vm473, %v482, %v486
        %v488 = vshrl.u32 %v408, 16
        %v490 = vrot.slane %v488, 4
        %v491 = vor.u32 %v490, %v486
        %v492 = vrot.slane %v491, 4
        %v494 = vshrl.u32 %v409, 16
        %v496 = vrot.slane %v494, 4
        %v497 = vshll.u32 %v409, 16
        %v499 = vrot.slane %v497, 5
        %v500 = vor.u32 %v496, %v499
        %v501 = vrot.slane %v500, 4
        %v503 = vshll.u32 %v410, 16
        %v505 = vrot.slane %v503, 5
        %v506 = vsel %vm473, %v501, %v505
        %v507 = vshrl.u32 %v410, 16
        %v509 = vrot.slane %v507, 4
        %v510 = vor.u32 %v509, %v505
        %v511 = vrot.slane %v510, 4
        %v513 = vshrl.u32 %v411, 16
        %v515 = vrot.slane %v513, 4
        %v516 = vshll.u32 %v411, 16
        %v518 = vrot.slane %v516, 5
        %v519 = vor.u32 %v515, %v518
        %v520 = vrot.slane %v519, 4
        %v522 = vshll.u32 %v412, 16
        %v524 = vrot.slane %v522, 5
        %v525 = vsel %vm473, %v520, %v524
        %v526 = vshrl.u32 %v412, 16
        %v528 = vrot.slane %v526, 4
        %v529 = vor.u32 %v528, %v524
        %v530 = vrot.slane %v529, 4
        %v532 = vshrl.u32 %v413, 16
        %v534 = vrot.slane %v532, 4
        %v535 = vshll.u32 %v413, 16
        %v537 = vrot.slane %v535, 5
        %v538 = vor.u32 %v534, %v537
        %v539 = vrot.slane %v538, 4
        %v541 = vshll.u32 %v414, 16
        %v543 = vrot.slane %v541, 5
        %v544 = vsel %vm473, %v539, %v543
        %v545 = vshrl.u32 %v414, 16
        %v547 = vrot.slane %v545, 4
        %v548 = vor.u32 %v547, %v543
        %v549 = vrot.slane %v548, 4
        %558 = vrot.lane.b32.xlu0 %v487, 127
        %v559 = vpop.permute.xlu0 %558
        %560 = vrot.lane.b32.xlu0 %v492, 127
        %v561 = vpop.permute.xlu0 %560
        %562 = vrot.lane.b32.xlu0 %v506, 127
        %v563 = vpop.permute.xlu0 %562
        %564 = vrot.lane.b32.xlu0 %v511, 127
        %v565 = vpop.permute.xlu0 %564
        %566 = vrot.lane.b32.xlu0 %v525, 127
        %v567 = vpop.permute.xlu0 %566
        %568 = vrot.lane.b32.xlu0 %v530, 127
        %v569 = vpop.permute.xlu0 %568
        %570 = vrot.lane.b32.xlu0 %v544, 127
        %v571 = vpop.permute.xlu0 %570
        %572 = vrot.lane.b32.xlu0 %v549, 127
        %v573 = vpop.permute.xlu0 %572
        %582 = vrot.lane.b32.xlu0 %v487, 126
        %v583 = vpop.permute.xlu0 %582
        %584 = vrot.lane.b32.xlu0 %v492, 126
        %v585 = vpop.permute.xlu0 %584
        %586 = vrot.lane.b32.xlu0 %v506, 126
        %v587 = vpop.permute.xlu0 %586
        %588 = vrot.lane.b32.xlu0 %v511, 126
        %v589 = vpop.permute.xlu0 %588
        %590 = vrot.lane.b32.xlu0 %v525, 126
        %v591 = vpop.permute.xlu0 %590
        %592 = vrot.lane.b32.xlu0 %v530, 126
        %v593 = vpop.permute.xlu0 %592
        %594 = vrot.lane.b32.xlu0 %v544, 126
        %v595 = vpop.permute.xlu0 %594
        %596 = vrot.lane.b32.xlu0 %v549, 126
        %v597 = vpop.permute.xlu0 %596
        %vm606 = vcmask 1042432
        %vm607 = vcmask 1046532
        %vm608 = vmor %vm606, %vm607
        %v609 = vrot.slane %v407, 5
        %v610 = vrot.slane %v609, 4
        %v611 = vrot.slane %v408, 5
        %v612 = vsel %vm608, %v610, %v611
        %v613 = vrot.slane %v611, 4
        %v614 = vrot.slane %v409, 5
        %v615 = vrot.slane %v614, 4
        %v616 = vrot.slane %v410, 5
        %v617 = vsel %vm608, %v615, %v616
        %v618 = vrot.slane %v616, 4
        %v619 = vrot.slane %v411, 5
        %v620 = vrot.slane %v619, 4
        %v621 = vrot.slane %v412, 5
        %v622 = vsel %vm608, %v620, %v621
        %v623 = vrot.slane %v621, 4
        %v624 = vrot.slane %v413, 5
        %v625 = vrot.slane %v624, 4
        %v626 = vrot.slane %v414, 5
        %v627 = vsel %vm608, %v625, %v626
        %v628 = vrot.slane %v626, 4
        %637 = vrot.lane.b32.xlu0 %v612, 127
        %v638 = vpop.permute.xlu0 %637
        %639 = vrot.lane.b32.xlu0 %v613, 127
        %v640 = vpop.permute.xlu0 %639
        %641 = vrot.lane.b32.xlu0 %v617, 127
        %v642 = vpop.permute.xlu0 %641
        %643 = vrot.lane.b32.xlu0 %v618, 127
        %v644 = vpop.permute.xlu0 %643
        %645 = vrot.lane.b32.xlu0 %v622, 127
        %v646 = vpop.permute.xlu0 %645
        %647 = vrot.lane.b32.xlu0 %v623, 127
        %v648 = vpop.permute.xlu0 %647
        %649 = vrot.lane.b32.xlu0 %v627, 127
        %v650 = vpop.permute.xlu0 %649
        %651 = vrot.lane.b32.xlu0 %v628, 127
        %v652 = vpop.permute.xlu0 %651
        %661 = vrot.lane.b32.xlu0 %v612, 126
        %v662 = vpop.permute.xlu0 %661
        %663 = vrot.lane.b32.xlu0 %v613, 126
        %v664 = vpop.permute.xlu0 %663
        %665 = vrot.lane.b32.xlu0 %v617, 126
        %v666 = vpop.permute.xlu0 %665
        %667 = vrot.lane.b32.xlu0 %v618, 126
        %v668 = vpop.permute.xlu0 %667
        %669 = vrot.lane.b32.xlu0 %v622, 126
        %v670 = vpop.permute.xlu0 %669
        %671 = vrot.lane.b32.xlu0 %v623, 126
        %v672 = vpop.permute.xlu0 %671
        %673 = vrot.lane.b32.xlu0 %v627, 126
        %v674 = vpop.permute.xlu0 %673
        %675 = vrot.lane.b32.xlu0 %v628, 126
        %v676 = vpop.permute.xlu0 %675
        %v677 = vcombine.low %v407, %v424
        %v679 = vunpack.c.l.s4 1983009808
        %v680 = vunpack.c.0.s8 %v679
        %v681 = vlaneseq
        %v682 = vshrl.u32 %v681, 7
        %v683 = vsub.s32 %v680, %v682
        %v684 = vrot.slane %v677, %v683
        %v685 = vcombine.low %v411, %v432
        %v687 = vunpack.c.l.s4 1983009808
        %v688 = vunpack.c.0.s8 %v687
        %v689 = vlaneseq
        %v690 = vshrl.u32 %v689, 7
        %v691 = vsub.s32 %v688, %v690
        %v692 = vrot.slane %v685, %v691
        %v693 = vcombine.low %v684, %v692
        %v694 = vcombine.high %v684, %v692
        %v696 = vunpack.c.l.s4 1934713408
        %v697 = vunpack.c.0.s8 %v696
        %v698 = vlaneseq
        %v699 = vshrl.u32 %v698, 7
        %v700 = vsub.s32 %v697, %v699
        %v701 = vrot.slane %v693, %v700
        %v703 = vunpack.c.l.s4 1934713408
        %v704 = vunpack.c.0.s8 %v703
        %v705 = vlaneseq
        %v706 = vshrl.u32 %v705, 7
        %v707 = vsub.s32 %v704, %v706
        %v708 = vrot.slane %v694, %v707
        %v709 = vcombine.high %v701, 0
        %v710 = vcombine.high %v708, 0
        %v711 = vcombine.low %v409, %v428
        %v713 = vunpack.c.l.s4 1983009808
        %v714 = vunpack.c.0.s8 %v713
        %v715 = vlaneseq
        %v716 = vshrl.u32 %v715, 7
        %v717 = vsub.s32 %v714, %v716
        %v718 = vrot.slane %v711, %v717
        %v719 = vcombine.low %v413, %v436
        %v721 = vunpack.c.l.s4 1983009808
        %v722 = vunpack.c.0.s8 %v721
        %v723 = vlaneseq
        %v724 = vshrl.u32 %v723, 7
        %v725 = vsub.s32 %v722, %v724
        %v726 = vrot.slane %v719, %v725
        %v727 = vcombine.low %v718, %v726
        %v728 = vcombine.high %v718, %v726
        %v730 = vunpack.c.l.s4 1934713408
        %v731 = vunpack.c.0.s8 %v730
        %v732 = vlaneseq
        %v733 = vshrl.u32 %v732, 7
        %v734 = vsub.s32 %v731, %v733
        %v735 = vrot.slane %v727, %v734
        %v737 = vunpack.c.l.s4 1934713408
        %v738 = vunpack.c.0.s8 %v737
        %v739 = vlaneseq
        %v740 = vshrl.u32 %v739, 7
        %v741 = vsub.s32 %v738, %v740
        %v742 = vrot.slane %v728, %v741
        %v743 = vcombine.high %v735, 0
        %v744 = vcombine.high %v742, 0
        %v745 = vcombine.low %v448, %v487
        %v747 = vunpack.c.l.s4 1983009808
        %v748 = vunpack.c.0.s8 %v747
        %v749 = vlaneseq
        %v750 = vshrl.u32 %v749, 7
        %v751 = vsub.s32 %v748, %v750
        %v752 = vrot.slane %v745, %v751
        %v753 = vcombine.low %v456, %v525
        %v755 = vunpack.c.l.s4 1983009808
        %v756 = vunpack.c.0.s8 %v755
        %v757 = vlaneseq
        %v758 = vshrl.u32 %v757, 7
        %v759 = vsub.s32 %v756, %v758
        %v760 = vrot.slane %v753, %v759
        %v761 = vcombine.low %v752, %v760
        %v762 = vcombine.high %v752, %v760
        %v764 = vunpack.c.l.s4 1934713408
        %v765 = vunpack.c.0.s8 %v764
        %v766 = vlaneseq
        %v767 = vshrl.u32 %v766, 7
        %v768 = vsub.s32 %v765, %v767
        %v769 = vrot.slane %v761, %v768
        %v771 = vunpack.c.l.s4 1934713408
        %v772 = vunpack.c.0.s8 %v771
        %v773 = vlaneseq
        %v774 = vshrl.u32 %v773, 7
        %v775 = vsub.s32 %v772, %v774
        %v776 = vrot.slane %v762, %v775
        %v777 = vcombine.high %v769, 0
        %v778 = vcombine.high %v776, 0
        %v779 = vcombine.low %v452, %v506
        %v781 = vunpack.c.l.s4 1983009808
        %v782 = vunpack.c.0.s8 %v781
        %v783 = vlaneseq
        %v784 = vshrl.u32 %v783, 7
        %v785 = vsub.s32 %v782, %v784
        %v786 = vrot.slane %v779, %v785
        %v787 = vcombine.low %v460, %v544
        %v789 = vunpack.c.l.s4 1983009808
        %v790 = vunpack.c.0.s8 %v789
        %v791 = vlaneseq
        %v792 = vshrl.u32 %v791, 7
        %v793 = vsub.s32 %v790, %v792
        %v794 = vrot.slane %v787, %v793
        %v795 = vcombine.low %v786, %v794
        %v796 = vcombine.high %v786, %v794
        %v798 = vunpack.c.l.s4 1934713408
        %v799 = vunpack.c.0.s8 %v798
        %v800 = vlaneseq
        %v801 = vshrl.u32 %v800, 7
        %v802 = vsub.s32 %v799, %v801
        %v803 = vrot.slane %v795, %v802
        %v805 = vunpack.c.l.s4 1934713408
        %v806 = vunpack.c.0.s8 %v805
        %v807 = vlaneseq
        %v808 = vshrl.u32 %v807, 7
        %v809 = vsub.s32 %v806, %v808
        %v810 = vrot.slane %v796, %v809
        %v811 = vcombine.high %v803, 0
        %v812 = vcombine.high %v810, 0
        %v813 = vcombine.low %v559, %v583
        %v815 = vunpack.c.l.s4 1983009808
        %v816 = vunpack.c.0.s8 %v815
        %v817 = vlaneseq
        %v818 = vshrl.u32 %v817, 7
        %v819 = vsub.s32 %v816, %v818
        %v820 = vrot.slane %v813, %v819
        %v821 = vcombine.low %v567, %v591
        %v823 = vunpack.c.l.s4 1983009808
        %v824 = vunpack.c.0.s8 %v823
        %v825 = vlaneseq
        %v826 = vshrl.u32 %v825, 7
        %v827 = vsub.s32 %v824, %v826
        %v828 = vrot.slane %v821, %v827
        %v829 = vcombine.low %v820, %v828
        %v830 = vcombine.high %v820, %v828
        %v832 = vunpack.c.l.s4 1934713408
        %v833 = vunpack.c.0.s8 %v832
        %v834 = vlaneseq
        %v835 = vshrl.u32 %v834, 7
        %v836 = vsub.s32 %v833, %v835
        %v837 = vrot.slane %v829, %v836
        %v839 = vunpack.c.l.s4 1934713408
        %v840 = vunpack.c.0.s8 %v839
        %v841 = vlaneseq
        %v842 = vshrl.u32 %v841, 7
        %v843 = vsub.s32 %v840, %v842
        %v844 = vrot.slane %v830, %v843
        %v845 = vcombine.high %v837, 0
        %v846 = vcombine.high %v844, 0
        %v847 = vcombine.low %v563, %v587
        %v849 = vunpack.c.l.s4 1983009808
        %v850 = vunpack.c.0.s8 %v849
        %v851 = vlaneseq
        %v852 = vshrl.u32 %v851, 7
        %v853 = vsub.s32 %v850, %v852
        %v854 = vrot.slane %v847, %v853
        %v855 = vcombine.low %v571, %v595
        %v857 = vunpack.c.l.s4 1983009808
        %v858 = vunpack.c.0.s8 %v857
        %v859 = vlaneseq
        %v860 = vshrl.u32 %v859, 7
        %v861 = vsub.s32 %v858, %v860
        %v862 = vrot.slane %v855, %v861
        %v863 = vcombine.low %v854, %v862
        %v864 = vcombine.high %v854, %v862
        %v866 = vunpack.c.l.s4 1934713408
        %v867 = vunpack.c.0.s8 %v866
        %v868 = vlaneseq
        %v869 = vshrl.u32 %v868, 7
        %v870 = vsub.s32 %v867, %v869
        %v871 = vrot.slane %v863, %v870
        %v873 = vunpack.c.l.s4 1934713408
        %v874 = vunpack.c.0.s8 %v873
        %v875 = vlaneseq
        %v876 = vshrl.u32 %v875, 7
        %v877 = vsub.s32 %v874, %v876
        %v878 = vrot.slane %v864, %v877
        %v879 = vcombine.high %v871, 0
        %v880 = vcombine.high %v878, 0
        %v881 = vcombine.low %v612, %v638
        %v883 = vunpack.c.l.s4 1983009808
        %v884 = vunpack.c.0.s8 %v883
        %v885 = vlaneseq
        %v886 = vshrl.u32 %v885, 7
        %v887 = vsub.s32 %v884, %v886
        %v888 = vrot.slane %v881, %v887
        %v889 = vcombine.low %v622, %v646
        %v891 = vunpack.c.l.s4 1983009808
        %v892 = vunpack.c.0.s8 %v891
        %v893 = vlaneseq
        %v894 = vshrl.u32 %v893, 7
        %v895 = vsub.s32 %v892, %v894
        %v896 = vrot.slane %v889, %v895
        %v897 = vcombine.low %v888, %v896
        %v898 = vcombine.high %v888, %v896
        %v900 = vunpack.c.l.s4 1934713408
        %v901 = vunpack.c.0.s8 %v900
        %v902 = vlaneseq
        %v903 = vshrl.u32 %v902, 7
        %v904 = vsub.s32 %v901, %v903
        %v905 = vrot.slane %v897, %v904
        %v907 = vunpack.c.l.s4 1934713408
        %v908 = vunpack.c.0.s8 %v907
        %v909 = vlaneseq
        %v910 = vshrl.u32 %v909, 7
        %v911 = vsub.s32 %v908, %v910
        %v912 = vrot.slane %v898, %v911
        %v913 = vcombine.high %v905, 0
        %v914 = vcombine.high %v912, 0
        %v915 = vcombine.low %v617, %v642
        %v917 = vunpack.c.l.s4 1983009808
        %v918 = vunpack.c.0.s8 %v917
        %v919 = vlaneseq
        %v920 = vshrl.u32 %v919, 7
        %v921 = vsub.s32 %v918, %v920
        %v922 = vrot.slane %v915, %v921
        %v923 = vcombine.low %v627, %v650
        %v925 = vunpack.c.l.s4 1983009808
        %v926 = vunpack.c.0.s8 %v925
        %v927 = vlaneseq
        %v928 = vshrl.u32 %v927, 7
        %v929 = vsub.s32 %v926, %v928
        %v930 = vrot.slane %v923, %v929
        %v931 = vcombine.low %v922, %v930
        %v932 = vcombine.high %v922, %v930
        %v934 = vunpack.c.l.s4 1934713408
        %v935 = vunpack.c.0.s8 %v934
        %v936 = vlaneseq
        %v937 = vshrl.u32 %v936, 7
        %v938 = vsub.s32 %v935, %v937
        %v939 = vrot.slane %v931, %v938
        %v941 = vunpack.c.l.s4 1934713408
        %v942 = vunpack.c.0.s8 %v941
        %v943 = vlaneseq
        %v944 = vshrl.u32 %v943, 7
        %v945 = vsub.s32 %v942, %v944
        %v946 = vrot.slane %v932, %v945
        %v947 = vcombine.high %v939, 0
        %v948 = vcombine.high %v946, 0
        %v951 = vunpack.c.l.s4 1983009808
        %v952 = vunpack.c.0.s8 %v951
        %v953 = vlaneseq
        %v954 = vshrl.u32 %v953, 7
        %v955 = vsub.s32 %v952, %v954
        %v956 = vrot.slane %v662, %v955
        %v959 = vunpack.c.l.s4 1983009808
        %v960 = vunpack.c.0.s8 %v959
        %v961 = vlaneseq
        %v962 = vshrl.u32 %v961, 7
        %v963 = vsub.s32 %v960, %v962
        %v964 = vrot.slane %v670, %v963
        %v965 = vcombine.low %v956, %v964
        %v966 = vcombine.high %v956, %v964
        %v968 = vunpack.c.l.s4 1934713408
        %v969 = vunpack.c.0.s8 %v968
        %v970 = vlaneseq
        %v971 = vshrl.u32 %v970, 7
        %v972 = vsub.s32 %v969, %v971
        %v973 = vrot.slane %v965, %v972
        %v975 = vunpack.c.l.s4 1934713408
        %v976 = vunpack.c.0.s8 %v975
        %v977 = vlaneseq
        %v978 = vshrl.u32 %v977, 7
        %v979 = vsub.s32 %v976, %v978
        %v980 = vrot.slane %v966, %v979
        %v981 = vcombine.high %v973, 0
        %v982 = vcombine.high %v980, 0
        %v985 = vunpack.c.l.s4 1983009808
        %v986 = vunpack.c.0.s8 %v985
        %v987 = vlaneseq
        %v988 = vshrl.u32 %v987, 7
        %v989 = vsub.s32 %v986, %v988
        %v990 = vrot.slane %v666, %v989
        %v993 = vunpack.c.l.s4 1983009808
        %v994 = vunpack.c.0.s8 %v993
        %v995 = vlaneseq
        %v996 = vshrl.u32 %v995, 7
        %v997 = vsub.s32 %v994, %v996
        %v998 = vrot.slane %v674, %v997
        %v999 = vcombine.low %v990, %v998
        %v1000 = vcombine.high %v990, %v998
        %v1002 = vunpack.c.l.s4 1934713408
        %v1003 = vunpack.c.0.s8 %v1002
        %v1004 = vlaneseq
        %v1005 = vshrl.u32 %v1004, 7
        %v1006 = vsub.s32 %v1003, %v1005
        %v1007 = vrot.slane %v999, %v1006
        %v1009 = vunpack.c.l.s4 1934713408
        %v1010 = vunpack.c.0.s8 %v1009
        %v1011 = vlaneseq
        %v1012 = vshrl.u32 %v1011, 7
        %v1013 = vsub.s32 %v1010, %v1012
        %v1014 = vrot.slane %v1000, %v1013
        %v1015 = vcombine.high %v1007, 0
        %v1016 = vcombine.high %v1014, 0
        %v1017 = vcombine.low %v408, %v426
        %v1019 = vunpack.c.l.s4 1983009808
        %v1020 = vunpack.c.0.s8 %v1019
        %v1021 = vlaneseq
        %v1022 = vshrl.u32 %v1021, 7
        %v1023 = vsub.s32 %v1020, %v1022
        %v1024 = vrot.slane %v1017, %v1023
        %v1025 = vcombine.low %v412, %v434
        %v1027 = vunpack.c.l.s4 1983009808
        %v1028 = vunpack.c.0.s8 %v1027
        %v1029 = vlaneseq
        %v1030 = vshrl.u32 %v1029, 7
        %v1031 = vsub.s32 %v1028, %v1030
        %v1032 = vrot.slane %v1025, %v1031
        %v1033 = vcombine.low %v1024, %v1032
        %v1035 = vunpack.c.l.s4 1934713408
        %v1036 = vunpack.c.0.s8 %v1035
        %v1037 = vlaneseq
        %v1038 = vshrl.u32 %v1037, 7
        %v1039 = vsub.s32 %v1036, %v1038
        %v1040 = vrot.slane %v1033, %v1039
        %v1041 = vcombine.low %v410, %v430
        %v1043 = vunpack.c.l.s4 1983009808
        %v1044 = vunpack.c.0.s8 %v1043
        %v1045 = vlaneseq
        %v1046 = vshrl.u32 %v1045, 7
        %v1047 = vsub.s32 %v1044, %v1046
        %v1048 = vrot.slane %v1041, %v1047
        %v1049 = vcombine.low %v414, %v438
        %v1051 = vunpack.c.l.s4 1983009808
        %v1052 = vunpack.c.0.s8 %v1051
        %v1053 = vlaneseq
        %v1054 = vshrl.u32 %v1053, 7
        %v1055 = vsub.s32 %v1052, %v1054
        %v1056 = vrot.slane %v1049, %v1055
        %v1057 = vcombine.low %v1048, %v1056
        %v1059 = vunpack.c.l.s4 1934713408
        %v1060 = vunpack.c.0.s8 %v1059
        %v1061 = vlaneseq
        %v1062 = vshrl.u32 %v1061, 7
        %v1063 = vsub.s32 %v1060, %v1062
        %v1064 = vrot.slane %v1057, %v1063
        %v1065 = vcombine.low %v450, %v492
        %v1067 = vunpack.c.l.s4 1983009808
        %v1068 = vunpack.c.0.s8 %v1067
        %v1069 = vlaneseq
        %v1070 = vshrl.u32 %v1069, 7
        %v1071 = vsub.s32 %v1068, %v1070
        %v1072 = vrot.slane %v1065, %v1071
        %v1073 = vcombine.low %v458, %v530
        %v1075 = vunpack.c.l.s4 1983009808
        %v1076 = vunpack.c.0.s8 %v1075
        %v1077 = vlaneseq
        %v1078 = vshrl.u32 %v1077, 7
        %v1079 = vsub.s32 %v1076, %v1078
        %v1080 = vrot.slane %v1073, %v1079
        %v1081 = vcombine.low %v1072, %v1080
        %v1083 = vunpack.c.l.s4 1934713408
        %v1084 = vunpack.c.0.s8 %v1083
        %v1085 = vlaneseq
        %v1086 = vshrl.u32 %v1085, 7
        %v1087 = vsub.s32 %v1084, %v1086
        %v1088 = vrot.slane %v1081, %v1087
        %v1089 = vcombine.low %v454, %v511
        %v1091 = vunpack.c.l.s4 1983009808
        %v1092 = vunpack.c.0.s8 %v1091
        %v1093 = vlaneseq
        %v1094 = vshrl.u32 %v1093, 7
        %v1095 = vsub.s32 %v1092, %v1094
        %v1096 = vrot.slane %v1089, %v1095
        %v1097 = vcombine.low %v462, %v549
        %v1099 = vunpack.c.l.s4 1983009808
        %v1100 = vunpack.c.0.s8 %v1099
        %v1101 = vlaneseq
        %v1102 = vshrl.u32 %v1101, 7
        %v1103 = vsub.s32 %v1100, %v1102
        %v1104 = vrot.slane %v1097, %v1103
        %v1105 = vcombine.low %v1096, %v1104
        %v1107 = vunpack.c.l.s4 1934713408
        %v1108 = vunpack.c.0.s8 %v1107
        %v1109 = vlaneseq
        %v1110 = vshrl.u32 %v1109, 7
        %v1111 = vsub.s32 %v1108, %v1110
        %v1112 = vrot.slane %v1105, %v1111
        %v1113 = vcombine.low %v561, %v585
        %v1115 = vunpack.c.l.s4 1983009808
        %v1116 = vunpack.c.0.s8 %v1115
        %v1117 = vlaneseq
        %v1118 = vshrl.u32 %v1117, 7
        %v1119 = vsub.s32 %v1116, %v1118
        %v1120 = vrot.slane %v1113, %v1119
        %v1121 = vcombine.low %v569, %v593
        %v1123 = vunpack.c.l.s4 1983009808
        %v1124 = vunpack.c.0.s8 %v1123
        %v1125 = vlaneseq
        %v1126 = vshrl.u32 %v1125, 7
        %v1127 = vsub.s32 %v1124, %v1126
        %v1128 = vrot.slane %v1121, %v1127
        %v1129 = vcombine.low %v1120, %v1128
        %v1131 = vunpack.c.l.s4 1934713408
        %v1132 = vunpack.c.0.s8 %v1131
        %v1133 = vlaneseq
        %v1134 = vshrl.u32 %v1133, 7
        %v1135 = vsub.s32 %v1132, %v1134
        %v1136 = vrot.slane %v1129, %v1135
        %v1137 = vcombine.low %v565, %v589
        %v1139 = vunpack.c.l.s4 1983009808
        %v1140 = vunpack.c.0.s8 %v1139
        %v1141 = vlaneseq
        %v1142 = vshrl.u32 %v1141, 7
        %v1143 = vsub.s32 %v1140, %v1142
        %v1144 = vrot.slane %v1137, %v1143
        %v1145 = vcombine.low %v573, %v597
        %v1147 = vunpack.c.l.s4 1983009808
        %v1148 = vunpack.c.0.s8 %v1147
        %v1149 = vlaneseq
        %v1150 = vshrl.u32 %v1149, 7
        %v1151 = vsub.s32 %v1148, %v1150
        %v1152 = vrot.slane %v1145, %v1151
        %v1153 = vcombine.low %v1144, %v1152
        %v1155 = vunpack.c.l.s4 1934713408
        %v1156 = vunpack.c.0.s8 %v1155
        %v1157 = vlaneseq
        %v1158 = vshrl.u32 %v1157, 7
        %v1159 = vsub.s32 %v1156, %v1158
        %v1160 = vrot.slane %v1153, %v1159
        %v1161 = vcombine.low %v613, %v640
        %v1163 = vunpack.c.l.s4 1983009808
        %v1164 = vunpack.c.0.s8 %v1163
        %v1165 = vlaneseq
        %v1166 = vshrl.u32 %v1165, 7
        %v1167 = vsub.s32 %v1164, %v1166
        %v1168 = vrot.slane %v1161, %v1167
        %v1169 = vcombine.low %v623, %v648
        %v1171 = vunpack.c.l.s4 1983009808
        %v1172 = vunpack.c.0.s8 %v1171
        %v1173 = vlaneseq
        %v1174 = vshrl.u32 %v1173, 7
        %v1175 = vsub.s32 %v1172, %v1174
        %v1176 = vrot.slane %v1169, %v1175
        %v1177 = vcombine.low %v1168, %v1176
        %v1179 = vunpack.c.l.s4 1934713408
        %v1180 = vunpack.c.0.s8 %v1179
        %v1181 = vlaneseq
        %v1182 = vshrl.u32 %v1181, 7
        %v1183 = vsub.s32 %v1180, %v1182
        %v1184 = vrot.slane %v1177, %v1183
        %v1185 = vcombine.low %v618, %v644
        %v1187 = vunpack.c.l.s4 1983009808
        %v1188 = vunpack.c.0.s8 %v1187
        %v1189 = vlaneseq
        %v1190 = vshrl.u32 %v1189, 7
        %v1191 = vsub.s32 %v1188, %v1190
        %v1192 = vrot.slane %v1185, %v1191
        %v1193 = vcombine.low %v628, %v652
        %v1195 = vunpack.c.l.s4 1983009808
        %v1196 = vunpack.c.0.s8 %v1195
        %v1197 = vlaneseq
        %v1198 = vshrl.u32 %v1197, 7
        %v1199 = vsub.s32 %v1196, %v1198
        %v1200 = vrot.slane %v1193, %v1199
        %v1201 = vcombine.low %v1192, %v1200
        %v1203 = vunpack.c.l.s4 1934713408
        %v1204 = vunpack.c.0.s8 %v1203
        %v1205 = vlaneseq
        %v1206 = vshrl.u32 %v1205, 7
        %v1207 = vsub.s32 %v1204, %v1206
        %v1208 = vrot.slane %v1201, %v1207
        %v1211 = vcombine.low %v664, %v672
        %v1213 = vunpack.c.l.s4 1934713408
        %v1214 = vunpack.c.0.s8 %v1213
        %v1215 = vlaneseq
        %v1216 = vshrl.u32 %v1215, 7
        %v1217 = vsub.s32 %v1214, %v1216
        %v1218 = vrot.slane %v1211, %v1217
        %v1221 = vcombine.low %v668, %v676
        %v1223 = vunpack.c.l.s4 1934713408
        %v1224 = vunpack.c.0.s8 %v1223
        %v1225 = vlaneseq
        %v1226 = vshrl.u32 %v1225, 7
        %v1227 = vsub.s32 %v1224, %v1226
        %v1228 = vrot.slane %v1221, %v1227
        %v1231 = vpack.i.b16 %v735, %v701
        %v1232 = vshrl.u32 %v701, 16
        %v1233 = vshrl.u32 %v735, 16
        %v1234 = vpack.i.b16 %v1233, %v1232
        %v1237 = vpack.i.b16 %v743, %v709
        %v1238 = vshrl.u32 %v709, 16
        %v1239 = vshrl.u32 %v743, 16
        %v1240 = vpack.i.b16 %v1239, %v1238
        %v1243 = vpack.i.b16 %v742, %v708
        %v1244 = vshrl.u32 %v708, 16
        %v1245 = vshrl.u32 %v742, 16
        %v1246 = vpack.i.b16 %v1245, %v1244
        %v1249 = vpack.i.b16 %v744, %v710
        %v1250 = vshrl.u32 %v710, 16
        %v1251 = vshrl.u32 %v744, 16
        %v1252 = vpack.i.b16 %v1251, %v1250
        %v1255 = vpack.i.b16 %v1064, %v1040
        %v1256 = vshrl.u32 %v1040, 16
        %v1257 = vshrl.u32 %v1064, 16
        %v1258 = vpack.i.b16 %v1257, %v1256
        %v1261 = vpack.i.b16 %v803, %v769
        %v1262 = vshrl.u32 %v769, 16
        %v1263 = vshrl.u32 %v803, 16
        %v1264 = vpack.i.b16 %v1263, %v1262
        %v1267 = vpack.i.b16 %v811, %v777
        %v1268 = vshrl.u32 %v777, 16
        %v1269 = vshrl.u32 %v811, 16
        %v1270 = vpack.i.b16 %v1269, %v1268
        %v1273 = vpack.i.b16 %v810, %v776
        %v1274 = vshrl.u32 %v776, 16
        %v1275 = vshrl.u32 %v810, 16
        %v1276 = vpack.i.b16 %v1275, %v1274
        %v1279 = vpack.i.b16 %v812, %v778
        %v1280 = vshrl.u32 %v778, 16
        %v1281 = vshrl.u32 %v812, 16
        %v1282 = vpack.i.b16 %v1281, %v1280
        %v1285 = vpack.i.b16 %v1112, %v1088
        %v1286 = vshrl.u32 %v1088, 16
        %v1287 = vshrl.u32 %v1112, 16
        %v1288 = vpack.i.b16 %v1287, %v1286
        %v1291 = vpack.i.b16 %v871, %v837
        %v1292 = vshrl.u32 %v837, 16
        %v1293 = vshrl.u32 %v871, 16
        %v1294 = vpack.i.b16 %v1293, %v1292
        %v1297 = vpack.i.b16 %v879, %v845
        %v1298 = vshrl.u32 %v845, 16
        %v1299 = vshrl.u32 %v879, 16
        %v1300 = vpack.i.b16 %v1299, %v1298
        %v1303 = vpack.i.b16 %v878, %v844
        %v1304 = vshrl.u32 %v844, 16
        %v1305 = vshrl.u32 %v878, 16
        %v1306 = vpack.i.b16 %v1305, %v1304
        %v1309 = vpack.i.b16 %v880, %v846
        %v1310 = vshrl.u32 %v846, 16
        %v1311 = vshrl.u32 %v880, 16
        %v1312 = vpack.i.b16 %v1311, %v1310
        %v1315 = vpack.i.b16 %v1160, %v1136
        %v1316 = vshrl.u32 %v1136, 16
        %v1317 = vshrl.u32 %v1160, 16
        %v1318 = vpack.i.b16 %v1317, %v1316
        %v1321 = vpack.i.b16 %v939, %v905
        %v1322 = vshrl.u32 %v905, 16
        %v1323 = vshrl.u32 %v939, 16
        %v1324 = vpack.i.b16 %v1323, %v1322
        %v1327 = vpack.i.b16 %v947, %v913
        %v1328 = vshrl.u32 %v913, 16
        %v1329 = vshrl.u32 %v947, 16
        %v1330 = vpack.i.b16 %v1329, %v1328
        %v1333 = vpack.i.b16 %v946, %v912
        %v1334 = vshrl.u32 %v912, 16
        %v1335 = vshrl.u32 %v946, 16
        %v1336 = vpack.i.b16 %v1335, %v1334
        %v1339 = vpack.i.b16 %v948, %v914
        %v1340 = vshrl.u32 %v914, 16
        %v1341 = vshrl.u32 %v948, 16
        %v1342 = vpack.i.b16 %v1341, %v1340
        %v1345 = vpack.i.b16 %v1208, %v1184
        %v1346 = vshrl.u32 %v1184, 16
        %v1347 = vshrl.u32 %v1208, 16
        %v1348 = vpack.i.b16 %v1347, %v1346
        %v1351 = vpack.i.b16 %v1007, %v973
        %v1352 = vshrl.u32 %v973, 16
        %v1353 = vshrl.u32 %v1007, 16
        %v1354 = vpack.i.b16 %v1353, %v1352
        %v1357 = vpack.i.b16 %v1015, %v981
        %v1358 = vshrl.u32 %v981, 16
        %v1359 = vshrl.u32 %v1015, 16
        %v1360 = vpack.i.b16 %v1359, %v1358
        %v1363 = vpack.i.b16 %v1014, %v980
        %v1364 = vshrl.u32 %v980, 16
        %v1365 = vshrl.u32 %v1014, 16
        %v1366 = vpack.i.b16 %v1365, %v1364
        %v1369 = vpack.i.b16 %v1016, %v982
        %v1370 = vshrl.u32 %v982, 16
        %v1371 = vshrl.u32 %v1016, 16
        %v1372 = vpack.i.b16 %v1371, %v1370
        %v1375 = vpack.i.b16 %v1228, %v1218
        %v1376 = vshrl.u32 %v1218, 16
        %v1377 = vshrl.u32 %v1228, 16
        %v1378 = vpack.i.b16 %v1377, %v1376
        %v1379 = vunpack.c.l.b16 %v1231
        %v1380 = vunpack.c.l.b16 %v1261
        %v1381 = vunpack.c.l.b16 %v1291
        %v1382 = vunpack.c.l.b16 %v1321
        %v1383 = vunpack.c.l.b16 %v1351
        %v1384 = vpack.c.b16 %v1380, %v1379
        %v1385 = vpack.c.b16 %v1382, %v1381
        %v1386 = vpack.c.b16 %v1383, %v1383
        %v1387 = vunpack.c.l.b16 %v1234
        %v1388 = vunpack.c.l.b16 %v1264
        %v1389 = vunpack.c.l.b16 %v1294
        %v1390 = vunpack.c.l.b16 %v1324
        %v1391 = vunpack.c.l.b16 %v1354
        %v1392 = vpack.c.b16 %v1388, %v1387
        %v1393 = vpack.c.b16 %v1390, %v1389
        %v1394 = vpack.c.b16 %v1391, %v1391
        %1395 = vrot.lane.b32.xlu0 %v1392, 16
        %v1396 = vpop.permute.xlu0 %1395
        %1397 = vrot.lane.b32.xlu0 %v1393, 16
        %v1398 = vpop.permute.xlu0 %1397
        %1399 = vrot.lane.b32.xlu0 %v1394, 16
        %v1400 = vpop.permute.xlu0 %1399
        %v1401 = vunpack.c.l.b16 %v1237
        %v1402 = vunpack.c.l.b16 %v1267
        %v1403 = vunpack.c.l.b16 %v1297
        %v1404 = vunpack.c.l.b16 %v1327
        %v1405 = vunpack.c.l.b16 %v1357
        %v1406 = vpack.c.b16 %v1402, %v1401
        %v1407 = vpack.c.b16 %v1404, %v1403
        %v1408 = vpack.c.b16 %v1405, %v1405
        %1409 = vrot.lane.b32.xlu0 %v1406, 32
        %v1410 = vpop.permute.xlu0 %1409
        %1411 = vrot.lane.b32.xlu0 %v1407, 32
        %v1412 = vpop.permute.xlu0 %1411
        %1413 = vrot.lane.b32.xlu0 %v1408, 32
        %v1414 = vpop.permute.xlu0 %1413
        %v1415 = vunpack.c.l.b16 %v1240
        %v1416 = vunpack.c.l.b16 %v1270
        %v1417 = vunpack.c.l.b16 %v1300
        %v1418 = vunpack.c.l.b16 %v1330
        %v1419 = vunpack.c.l.b16 %v1360
        %v1420 = vpack.c.b16 %v1416, %v1415
        %v1421 = vpack.c.b16 %v1418, %v1417
        %v1422 = vpack.c.b16 %v1419, %v1419
        %1423 = vrot.lane.b32.xlu0 %v1420, 48
        %v1424 = vpop.permute.xlu0 %1423
        %1425 = vrot.lane.b32.xlu0 %v1421, 48
        %v1426 = vpop.permute.xlu0 %1425
        %1427 = vrot.lane.b32.xlu0 %v1422, 48
        %v1428 = vpop.permute.xlu0 %1427
        %v1429 = vunpack.c.l.b16 %v1243
        %v1430 = vunpack.c.l.b16 %v1273
        %v1431 = vunpack.c.l.b16 %v1303
        %v1432 = vunpack.c.l.b16 %v1333
        %v1433 = vunpack.c.l.b16 %v1363
        %v1434 = vpack.c.b16 %v1430, %v1429
        %v1435 = vpack.c.b16 %v1432, %v1431
        %v1436 = vpack.c.b16 %v1433, %v1433
        %1437 = vrot.lane.b32.xlu0 %v1434, 64
        %v1438 = vpop.permute.xlu0 %1437
        %1439 = vrot.lane.b32.xlu0 %v1435, 64
        %v1440 = vpop.permute.xlu0 %1439
        %1441 = vrot.lane.b32.xlu0 %v1436, 64
        %v1442 = vpop.permute.xlu0 %1441
        %v1443 = vunpack.c.l.b16 %v1246
        %v1444 = vunpack.c.l.b16 %v1276
        %v1445 = vunpack.c.l.b16 %v1306
        %v1446 = vunpack.c.l.b16 %v1336
        %v1447 = vunpack.c.l.b16 %v1366
        %v1448 = vpack.c.b16 %v1444, %v1443
        %v1449 = vpack.c.b16 %v1446, %v1445
        %v1450 = vpack.c.b16 %v1447, %v1447
        %1451 = vrot.lane.b32.xlu0 %v1448, 80
        %v1452 = vpop.permute.xlu0 %1451
        %1453 = vrot.lane.b32.xlu0 %v1449, 80
        %v1454 = vpop.permute.xlu0 %1453
        %1455 = vrot.lane.b32.xlu0 %v1450, 80
        %v1456 = vpop.permute.xlu0 %1455
        %v1457 = vunpack.c.l.b16 %v1249
        %v1458 = vunpack.c.l.b16 %v1279
        %v1459 = vunpack.c.l.b16 %v1309
        %v1460 = vunpack.c.l.b16 %v1339
        %v1461 = vunpack.c.l.b16 %v1369
        %v1462 = vpack.c.b16 %v1458, %v1457
        %v1463 = vpack.c.b16 %v1460, %v1459
        %v1464 = vpack.c.b16 %v1461, %v1461
        %1465 = vrot.lane.b32.xlu0 %v1462, 96
        %v1466 = vpop.permute.xlu0 %1465
        %1467 = vrot.lane.b32.xlu0 %v1463, 96
        %v1468 = vpop.permute.xlu0 %1467
        %1469 = vrot.lane.b32.xlu0 %v1464, 96
        %v1470 = vpop.permute.xlu0 %1469
        %v1471 = vunpack.c.l.b16 %v1252
        %v1472 = vunpack.c.l.b16 %v1282
        %v1473 = vunpack.c.l.b16 %v1312
        %v1474 = vunpack.c.l.b16 %v1342
        %v1475 = vunpack.c.l.b16 %v1372
        %v1476 = vpack.c.b16 %v1472, %v1471
        %v1477 = vpack.c.b16 %v1474, %v1473
        %v1478 = vpack.c.b16 %v1475, %v1475
        %1479 = vrot.lane.b32.xlu0 %v1476, 112
        %v1480 = vpop.permute.xlu0 %1479
        %1481 = vrot.lane.b32.xlu0 %v1477, 112
        %v1482 = vpop.permute.xlu0 %1481
        %1483 = vrot.lane.b32.xlu0 %v1478, 112
        %v1484 = vpop.permute.xlu0 %1483
        %v1485 = vunpack.c.l.b16 %v1255
        %v1486 = vunpack.c.l.b16 %v1285
        %v1487 = vunpack.c.l.b16 %v1315
        %v1488 = vunpack.c.l.b16 %v1345
        %v1489 = vunpack.c.l.b16 %v1375
        %v1490 = vpack.c.b16 %v1486, %v1485
        %v1491 = vpack.c.b16 %v1488, %v1487
        %v1492 = vpack.c.b16 %v1489, %v1489
        %v1493 = vunpack.c.l.b16 %v1258
        %v1494 = vunpack.c.l.b16 %v1288
        %v1495 = vunpack.c.l.b16 %v1318
        %v1496 = vunpack.c.l.b16 %v1348
        %v1497 = vunpack.c.l.b16 %v1378
        %v1498 = vpack.c.b16 %v1494, %v1493
        %v1499 = vpack.c.b16 %v1496, %v1495
        %v1500 = vpack.c.b16 %v1497, %v1497
        %1501 = vrot.lane.b32.xlu0 %v1498, 16
        %v1502 = vpop.permute.xlu0 %1501
        %1503 = vrot.lane.b32.xlu0 %v1499, 16
        %v1504 = vpop.permute.xlu0 %1503
        %1505 = vrot.lane.b32.xlu0 %v1500, 16
        %v1506 = vpop.permute.xlu0 %1505
        %vm1507 = vcmask 130048
        %v1510 = vsel %vm1507, %v1384, %v1396
        %v1513 = vsel %vm1507, %v1385, %v1398
        %v1516 = vsel %vm1507, %v1386, %v1400
        %vm1517 = vcmask 261120
        %v1519 = vsel %vm1517, %v1510, %v1410
        %v1521 = vsel %vm1517, %v1513, %v1412
        %v1523 = vsel %vm1517, %v1516, %v1414
        %vm1524 = vcmask 392192
        %v1526 = vsel %vm1524, %v1519, %v1424
        %v1528 = vsel %vm1524, %v1521, %v1426
        %v1530 = vsel %vm1524, %v1523, %v1428
        %vm1531 = vcmask 523264
        %v1533 = vsel %vm1531, %v1526, %v1438
        %v1535 = vsel %vm1531, %v1528, %v1440
        %v1537 = vsel %vm1531, %v1530, %v1442
        %vm1538 = vcmask 654336
        %v1540 = vsel %vm1538, %v1533, %v1452
        %v1542 = vsel %vm1538, %v1535, %v1454
        %v1544 = vsel %vm1538, %v1537, %v1456
        %vm1545 = vcmask 785408
        %v1547 = vsel %vm1545, %v1540, %v1466
        %v1549 = vsel %vm1545, %v1542, %v1468
        %v1551 = vsel %vm1545, %v1544, %v1470
        %vm1552 = vcmask 916480
        %v1554 = vsel %vm1552, %v1547, %v1480
        %v1557 = vsel %vm1552, %v1549, %v1482
        %v1560 = vsel %vm1552, %v1551, %v1484
        %v1563 = vsel %vm1507, %v1490, %v1502
        %v1567 = vsel %vm1507, %v1491, %v1504
        %v1571 = vsel %vm1507, %v1492, %v1506
        %v1572 = vld [vmem:[%s1] sm:$0xf]
        %v1573 = vld [vmem:[%s2] sm:$0xff]
        %1575 = vset.pattern.permute.xlu0 0
        %1576 = vperm.xlu0 %1575, %v1573
        %v1577 = vpop.permute.xlu0 %1576
        %vm1579 = vcmask 293888
        %v1581 = vsel %vm1579, %v1572, 0
        %vm1583 = vcmask 1041408
        %v1584 = vsel %vm1583, %v1560, 0
        %v1586 = vsel %vm1583, %v1571, 0
        %1588 = vmatprep.subr.bf16.mxu0 0
        %1589 = vmatpush1.bf16.msra.mxu0 0
        %1590 = vmatprep.subr.bf16.mxu0 0
        %1591 = vmatpush1.bf16.msra.mxu0 0
        %1592 = vmatprep.subr.bf16.mxu0 0
        %1593 = vmatpush1.bf16.msra.mxu0 0
        %1594 = vmatprep.subr.bf16.mxu0 0
        %1595 = vmatpush1.bf16.msra.mxu0 0
        %1596 = vmatprep.subr.bf16.mxu0 0
        %1597 = vmatpush1.bf16.msra.mxu0 0
        %1598 = vmatprep.subr.bf16.mxu0 %v1586
        %1599 = vmatpush1.bf16.msra.mxu0 %v1584
        %1600 = vmatprep.subr.bf16.mxu0 %v1567
        %1601 = vmatpush1.bf16.msra.mxu0 %v1557
        %1602 = vmatprep.subr.bf16.mxu0 %v1563
        %1603 = vmatpush1.bf16.msra.mxu0 %v1554
        %1604 = vmatprep.subr.bf16.mxu0 0
        %1605 = vmatpush2.bf16.msra.mxu0 0
        %1606 = vmatprep.subr.bf16.mxu0 0
        %1607 = vmatpush2.bf16.msra.mxu0 0
        %1608 = vmatprep.subr.bf16.mxu0 0
        %1609 = vmatpush2.bf16.msra.mxu0 0
        %1610 = vmatprep.subr.bf16.mxu0 0
        %1611 = vmatpush2.bf16.msra.mxu0 0
        %1612 = vmatprep.subr.bf16.mxu0 0
        %1613 = vmatpush2.bf16.msra.mxu0 0
        %1614 = vmatprep.subr.bf16.mxu0 0
        %1615 = vmatpush2.bf16.msra.mxu0 0
        %1616 = vmatprep.subr.bf16.mxu0 0
        %1617 = vmatpush2.bf16.msra.mxu0 0
        %1618 = vmatprep.subr.bf16.mxu0 0
        %1619 = vmatpush2.bf16.msra.mxu0 0
        %1620 = vmatprep.mubr.bf16.mxu0 0
        %1621 = vmatmul.mubr.bf16.gmra.mxu0 %v1581
        %v1622 = vpop.f32.mrf.mxu0
        %v1623 = vadd.f32 %v1577, %v1622
        %v1624 = vpop.f32.mrf.mxu0
        %v1625 = vadd.f32 %v1577, %v1624
        %v1626 = vpop.f32.mrf.mxu0
        %v1627 = vpop.f32.mrf.mxu0
        %1628 = vdwg.mxu0
        %v1629 = vmax.f32 %v1623, 0.0
        %v1630 = vmax.f32 %v1625, 0.0
        %1632 = vrot.lane.b32.xlu0 %v1629, 112
        %v1633 = vpop.permute.xlu0 %1632
        %1635 = vrot.lane.b32.xlu0 %v1629, 96
        %v1636 = vpop.permute.xlu0 %1635
        %1638 = vrot.lane.b32.xlu0 %v1629, 80
        %v1639 = vpop.permute.xlu0 %1638
        %1641 = vrot.lane.b32.xlu0 %v1629, 64
        %v1642 = vpop.permute.xlu0 %1641
        %1644 = vrot.lane.b32.xlu0 %v1629, 48
        %v1645 = vpop.permute.xlu0 %1644
        %1647 = vrot.lane.b32.xlu0 %v1629, 32
        %v1648 = vpop.permute.xlu0 %1647
        %1650 = vrot.lane.b32.xlu0 %v1629, 16
        %v1651 = vpop.permute.xlu0 %1650
        %1654 = vrot.lane.b32.xlu0 %v1630, 112
        %v1655 = vpop.permute.xlu0 %1654
        %v1657 = vcombine.low %v1629, %v1636
        %v1658 = vcombine.high %v1629, %v1636
        %v1660 = vunpack.c.l.s4 1983009808
        %v1661 = vunpack.c.0.s8 %v1660
        %v1662 = vlaneseq
        %v1663 = vshrl.u32 %v1662, 7
        %v1664 = vsub.s32 %v1661, %v1663
        %v1665 = vrot.slane %v1657, %v1664
        %v1667 = vunpack.c.l.s4 1983009808
        %v1668 = vunpack.c.0.s8 %v1667
        %v1669 = vlaneseq
        %v1670 = vshrl.u32 %v1669, 7
        %v1671 = vsub.s32 %v1668, %v1670
        %v1672 = vrot.slane %v1658, %v1671
        %v1673 = vcombine.low %v1633, %v1639
        %v1674 = vcombine.high %v1633, %v1639
        %v1676 = vunpack.c.l.s4 1983009808
        %v1677 = vunpack.c.0.s8 %v1676
        %v1678 = vlaneseq
        %v1679 = vshrl.u32 %v1678, 7
        %v1680 = vsub.s32 %v1677, %v1679
        %v1681 = vrot.slane %v1673, %v1680
        %v1683 = vunpack.c.l.s4 1983009808
        %v1684 = vunpack.c.0.s8 %v1683
        %v1685 = vlaneseq
        %v1686 = vshrl.u32 %v1685, 7
        %v1687 = vsub.s32 %v1684, %v1686
        %v1688 = vrot.slane %v1674, %v1687
        %v1689 = vcombine.low %v1642, %v1648
        %v1690 = vcombine.high %v1642, %v1648
        %v1692 = vunpack.c.l.s4 1983009808
        %v1693 = vunpack.c.0.s8 %v1692
        %v1694 = vlaneseq
        %v1695 = vshrl.u32 %v1694, 7
        %v1696 = vsub.s32 %v1693, %v1695
        %v1697 = vrot.slane %v1689, %v1696
        %v1699 = vunpack.c.l.s4 1983009808
        %v1700 = vunpack.c.0.s8 %v1699
        %v1701 = vlaneseq
        %v1702 = vshrl.u32 %v1701, 7
        %v1703 = vsub.s32 %v1700, %v1702
        %v1704 = vrot.slane %v1690, %v1703
        %v1705 = vcombine.low %v1645, %v1651
        %v1706 = vcombine.high %v1645, %v1651
        %v1708 = vunpack.c.l.s4 1983009808
        %v1709 = vunpack.c.0.s8 %v1708
        %v1710 = vlaneseq
        %v1711 = vshrl.u32 %v1710, 7
        %v1712 = vsub.s32 %v1709, %v1711
        %v1713 = vrot.slane %v1705, %v1712
        %v1715 = vunpack.c.l.s4 1983009808
        %v1716 = vunpack.c.0.s8 %v1715
        %v1717 = vlaneseq
        %v1718 = vshrl.u32 %v1717, 7
        %v1719 = vsub.s32 %v1716, %v1718
        %v1720 = vrot.slane %v1706, %v1719
        %v1721 = vcombine.low %v1665, %v1681
        %v1722 = vcombine.high %v1665, %v1681
        %v1724 = vunpack.c.l.s4 1934713408
        %v1725 = vunpack.c.0.s8 %v1724
        %v1726 = vlaneseq
        %v1727 = vshrl.u32 %v1726, 7
        %v1728 = vsub.s32 %v1725, %v1727
        %v1729 = vrot.slane %v1721, %v1728
        %v1731 = vunpack.c.l.s4 1934713408
        %v1732 = vunpack.c.0.s8 %v1731
        %v1733 = vlaneseq
        %v1734 = vshrl.u32 %v1733, 7
        %v1735 = vsub.s32 %v1732, %v1734
        %v1736 = vrot.slane %v1722, %v1735
        %v1737 = vcombine.low %v1672, %v1688
        %v1738 = vcombine.high %v1672, %v1688
        %v1740 = vunpack.c.l.s4 1934713408
        %v1741 = vunpack.c.0.s8 %v1740
        %v1742 = vlaneseq
        %v1743 = vshrl.u32 %v1742, 7
        %v1744 = vsub.s32 %v1741, %v1743
        %v1745 = vrot.slane %v1737, %v1744
        %v1747 = vunpack.c.l.s4 1934713408
        %v1748 = vunpack.c.0.s8 %v1747
        %v1749 = vlaneseq
        %v1750 = vshrl.u32 %v1749, 7
        %v1751 = vsub.s32 %v1748, %v1750
        %v1752 = vrot.slane %v1738, %v1751
        %v1753 = vcombine.low %v1697, %v1713
        %v1754 = vcombine.high %v1697, %v1713
        %v1756 = vunpack.c.l.s4 1934713408
        %v1757 = vunpack.c.0.s8 %v1756
        %v1758 = vlaneseq
        %v1759 = vshrl.u32 %v1758, 7
        %v1760 = vsub.s32 %v1757, %v1759
        %v1761 = vrot.slane %v1753, %v1760
        %v1763 = vunpack.c.l.s4 1934713408
        %v1764 = vunpack.c.0.s8 %v1763
        %v1765 = vlaneseq
        %v1766 = vshrl.u32 %v1765, 7
        %v1767 = vsub.s32 %v1764, %v1766
        %v1768 = vrot.slane %v1754, %v1767
        %v1769 = vcombine.low %v1704, %v1720
        %v1770 = vcombine.high %v1704, %v1720
        %v1772 = vunpack.c.l.s4 1934713408
        %v1773 = vunpack.c.0.s8 %v1772
        %v1774 = vlaneseq
        %v1775 = vshrl.u32 %v1774, 7
        %v1776 = vsub.s32 %v1773, %v1775
        %v1777 = vrot.slane %v1769, %v1776
        %v1779 = vunpack.c.l.s4 1934713408
        %v1780 = vunpack.c.0.s8 %v1779
        %v1781 = vlaneseq
        %v1782 = vshrl.u32 %v1781, 7
        %v1783 = vsub.s32 %v1780, %v1782
        %v1784 = vrot.slane %v1770, %v1783
        %v1785 = vcombine.low %v1729, %v1761
        %v1786 = vcombine.high %v1729, %v1761
        %v1787 = vcombine.low %v1736, %v1768
        %v1788 = vcombine.high %v1736, %v1768
        %v1789 = vcombine.low %v1745, %v1777
        %v1790 = vcombine.high %v1745, %v1777
        %v1791 = vcombine.low %v1752, %v1784
        %v1792 = vcombine.high %v1752, %v1784
        %v1793 = vcombine.high %v1630, 0.0
        %v1795 = vunpack.c.l.s4 1983009808
        %v1796 = vunpack.c.0.s8 %v1795
        %v1797 = vlaneseq
        %v1798 = vshrl.u32 %v1797, 7
        %v1799 = vsub.s32 %v1796, %v1798
        %v1800 = vrot.slane %v1630, %v1799
        %v1802 = vunpack.c.l.s4 1983009808
        %v1803 = vunpack.c.0.s8 %v1802
        %v1804 = vlaneseq
        %v1805 = vshrl.u32 %v1804, 7
        %v1806 = vsub.s32 %v1803, %v1805
        %v1807 = vrot.slane %v1793, %v1806
        %v1808 = vcombine.high %v1655, 0.0
        %v1810 = vunpack.c.l.s4 1983009808
        %v1811 = vunpack.c.0.s8 %v1810
        %v1812 = vlaneseq
        %v1813 = vshrl.u32 %v1812, 7
        %v1814 = vsub.s32 %v1811, %v1813
        %v1815 = vrot.slane %v1655, %v1814
        %v1817 = vunpack.c.l.s4 1983009808
        %v1818 = vunpack.c.0.s8 %v1817
        %v1819 = vlaneseq
        %v1820 = vshrl.u32 %v1819, 7
        %v1821 = vsub.s32 %v1818, %v1820
        %v1822 = vrot.slane %v1808, %v1821
        %v1823 = vcombine.low %v1800, %v1815
        %v1824 = vcombine.high %v1800, %v1815
        %v1826 = vunpack.c.l.s4 1934713408
        %v1827 = vunpack.c.0.s8 %v1826
        %v1828 = vlaneseq
        %v1829 = vshrl.u32 %v1828, 7
        %v1830 = vsub.s32 %v1827, %v1829
        %v1831 = vrot.slane %v1823, %v1830
        %v1833 = vunpack.c.l.s4 1934713408
        %v1834 = vunpack.c.0.s8 %v1833
        %v1835 = vlaneseq
        %v1836 = vshrl.u32 %v1835, 7
        %v1837 = vsub.s32 %v1834, %v1836
        %v1838 = vrot.slane %v1824, %v1837
        %v1839 = vcombine.low %v1807, %v1822
        %v1840 = vcombine.high %v1807, %v1822
        %v1842 = vunpack.c.l.s4 1934713408
        %v1843 = vunpack.c.0.s8 %v1842
        %v1844 = vlaneseq
        %v1845 = vshrl.u32 %v1844, 7
        %v1846 = vsub.s32 %v1843, %v1845
        %v1847 = vrot.slane %v1839, %v1846
        %v1849 = vunpack.c.l.s4 1934713408
        %v1850 = vunpack.c.0.s8 %v1849
        %v1851 = vlaneseq
        %v1852 = vshrl.u32 %v1851, 7
        %v1853 = vsub.s32 %v1850, %v1852
        %v1854 = vrot.slane %v1840, %v1853
        %v1855 = vcombine.high %v1831, 0.0
        %v1856 = vcombine.high %v1838, 0.0
        %v1857 = vcombine.high %v1847, 0.0
        %v1858 = vcombine.high %v1854, 0.0
        %s1859 = ssub.s32 %s258, 1
        %v1860 = vlaneseq
        %v1861 = vshrl.u32 %v1860, 7
        %v1862 = vadd.s32 %v1861, 8
        %v1863 = vstv %s1859
        %v1864 = vadd.s32 %v1863, %v1861
        %v1865 = vadd.s32 %v1863, %v1862
        %vm1866 = vcmp.ge.s32.totalorder %v1864, 0
        %vm1867 = vcmp.ge.s32.totalorder %v1865, 0
        %vm1868 = vcmp.lt.s32.totalorder %v1864, 16
        %vm1869 = vcmp.lt.s32.totalorder %v1865, 16
        %vm1870 = vmand %vm1866, %vm1868
        %vm1871 = vmand %vm1867, %vm1869
        %v1872 = vsel %vm1870, 1, 0
        %v1873 = vsel %vm1871, 1, 0
        %vm1874 = vcmp.eq.s32.totalorder %v1872, 1
        %vm1875 = vcmp.eq.s32.totalorder %v1873, 1
        %v1876 = vsel %vm1874, %v1785, 0.0
        %v1877 = vsel %vm1875, %v1831, 0.0
        %v1878 = vsel %vm1874, %v1786, 0.0
        %v1879 = vsel %vm1875, %v1855, 0.0
        %v1880 = vsel %vm1874, %v1787, 0.0
        %v1881 = vsel %vm1875, %v1838, 0.0
        %v1882 = vsel %vm1874, %v1788, 0.0
        %v1883 = vsel %vm1875, %v1856, 0.0
        %v1884 = vsel %vm1874, %v1789, 0.0
        %v1885 = vsel %vm1875, %v1847, 0.0
        %v1886 = vsel %vm1874, %v1790, 0.0
        %v1887 = vsel %vm1875, %v1857, 0.0
        %v1888 = vsel %vm1874, %v1791, 0.0
        %v1889 = vsel %vm1875, %v1854, 0.0
        %v1890 = vsel %vm1874, %v1792, 0.0
        %v1891 = vsel %vm1875, %v1858, 0.0
        %v1892 = vpack.c.bf16 %v1877, %v1876
        %v1893 = vpack.c.bf16 %v1879, %v1878
        %v1894 = vpack.c.bf16 %v1881, %v1880
        %v1895 = vpack.c.bf16 %v1883, %v1882
        %v1896 = vpack.c.bf16 %v1885, %v1884
        %v1897 = vpack.c.bf16 %v1887, %v1886
        %v1898 = vpack.c.bf16 %v1889, %v1888
        %v1899 = vpack.c.bf16 %v1891, %v1890
        %v1908 = vunpack.c.l.b16 %v1892
        %v1909 = vunpack.c.h.b16 %v1892
        %v1910 = vunpack.c.l.b16 %v1893
        %v1911 = vunpack.c.h.b16 %v1893
        %v1912 = vunpack.c.l.b16 %v1894
        %v1913 = vunpack.c.h.b16 %v1894
        %v1914 = vunpack.c.l.b16 %v1895
        %v1915 = vunpack.c.h.b16 %v1895
        %v1916 = vunpack.c.l.b16 %v1896
        %v1917 = vunpack.c.h.b16 %v1896
        %v1918 = vunpack.c.l.b16 %v1897
        %v1919 = vunpack.c.h.b16 %v1897
        %v1920 = vunpack.c.l.b16 %v1898
        %v1921 = vunpack.c.h.b16 %v1898
        %v1922 = vunpack.c.l.b16 %v1899
        %v1923 = vunpack.c.h.b16 %v1899
        %v1924 = vpack.c.b16 %v1908, %v1908
        %v1925 = vpack.c.b16 %v1909, %v1909
        %v1926 = vpack.c.b16 %v1910, %v1910
        %v1927 = vpack.c.b16 %v1911, %v1911
        %v1928 = vpack.c.b16 %v1912, %v1912
        %v1929 = vpack.c.b16 %v1913, %v1913
        %v1930 = vpack.c.b16 %v1914, %v1914
        %v1931 = vpack.c.b16 %v1915, %v1915
        %v1932 = vpack.c.b16 %v1916, %v1916
        %v1933 = vpack.c.b16 %v1917, %v1917
        %v1934 = vpack.c.b16 %v1918, %v1918
        %v1935 = vpack.c.b16 %v1919, %v1919
        %v1936 = vpack.c.b16 %v1920, %v1920
        %v1937 = vpack.c.b16 %v1921, %v1921
        %v1938 = vpack.c.b16 %v1922, %v1922
        %v1939 = vpack.c.b16 %v1923, %v1923
        %1940 = vrot.lane.b32.xlu0 %v1924, 1
        %v1941 = vpop.permute.xlu0 %1940
        %1942 = vrot.lane.b32.xlu0 %v1925, 1
        %v1943 = vpop.permute.xlu0 %1942
        %1944 = vrot.lane.b32.xlu0 %v1926, 1
        %v1945 = vpop.permute.xlu0 %1944
        %1946 = vrot.lane.b32.xlu0 %v1927, 1
        %v1947 = vpop.permute.xlu0 %1946
        %1948 = vrot.lane.b32.xlu0 %v1928, 1
        %v1949 = vpop.permute.xlu0 %1948
        %1950 = vrot.lane.b32.xlu0 %v1929, 1
        %v1951 = vpop.permute.xlu0 %1950
        %1952 = vrot.lane.b32.xlu0 %v1930, 1
        %v1953 = vpop.permute.xlu0 %1952
        %1954 = vrot.lane.b32.xlu0 %v1931, 1
        %v1955 = vpop.permute.xlu0 %1954
        %1956 = vrot.lane.b32.xlu0 %v1932, 1
        %v1957 = vpop.permute.xlu0 %1956
        %1958 = vrot.lane.b32.xlu0 %v1933, 1
        %v1959 = vpop.permute.xlu0 %1958
        %1960 = vrot.lane.b32.xlu0 %v1934, 1
        %v1961 = vpop.permute.xlu0 %1960
        %1962 = vrot.lane.b32.xlu0 %v1935, 1
        %v1963 = vpop.permute.xlu0 %1962
        %1964 = vrot.lane.b32.xlu0 %v1936, 1
        %v1965 = vpop.permute.xlu0 %1964
        %1966 = vrot.lane.b32.xlu0 %v1937, 1
        %v1967 = vpop.permute.xlu0 %1966
        %1968 = vrot.lane.b32.xlu0 %v1938, 1
        %v1969 = vpop.permute.xlu0 %1968
        %1970 = vrot.lane.b32.xlu0 %v1939, 1
        %v1971 = vpop.permute.xlu0 %1970
        %1988 = vst.msk [vmem:[#allocation3] sm:$0xf] %vm352, %v1941
        %1989 = vst.msk [vmem:[#allocation3 + $0x4] sm:$0x1] %vm354, %v1943
        %1990 = vst.msk [vmem:[#allocation3 + $0x8] sm:$0xf] %vm352, %v1945
        %1991 = vst.msk [vmem:[#allocation3 + $0xc] sm:$0x1] %vm354, %v1947
        %1992 = vst.msk [vmem:[#allocation3 + $0x10] sm:$0xf] %vm352, %v1949
        %1993 = vst.msk [vmem:[#allocation3 + $0x14] sm:$0x1] %vm354, %v1951
        %1994 = vst.msk [vmem:[#allocation3 + $0x18] sm:$0xf] %vm352, %v1953
        %1995 = vst.msk [vmem:[#allocation3 + $0x1c] sm:$0x1] %vm354, %v1955
        %1996 = vst.msk [vmem:[#allocation3 + $0x20] sm:$0xf] %vm352, %v1957
        %1997 = vst.msk [vmem:[#allocation3 + $0x24] sm:$0x1] %vm354, %v1959
        %1998 = vst.msk [vmem:[#allocation3 + $0x28] sm:$0xf] %vm352, %v1961
        %1999 = vst.msk [vmem:[#allocation3 + $0x2c] sm:$0x1] %vm354, %v1963
        %2000 = vst.msk [vmem:[#allocation3 + $0x30] sm:$0xf] %vm352, %v1965
        %2001 = vst.msk [vmem:[#allocation3 + $0x34] sm:$0x1] %vm354, %v1967
        %2002 = vst.msk [vmem:[#allocation3 + $0x38] sm:$0xf] %vm352, %v1969
        %2003 = vst.msk [vmem:[#allocation3 + $0x3c] sm:$0x1] %vm354, %v1971
        %2004 = vst.msk [vmem:[#allocation3] sm:$0xf] %vm375, 0
        %vm2005 = vcmask 0
        %2006 = vst.msk [vmem:[#allocation3 + $0x4] sm:$0x1] %vm2005, 0
        %2007 = vst.msk [vmem:[#allocation3 + $0x8] sm:$0xf] %vm375, 0
        %2008 = vst.msk [vmem:[#allocation3 + $0xc] sm:$0x1] %vm2005, 0
        %2009 = vst.msk [vmem:[#allocation3 + $0x10] sm:$0xf] %vm375, 0
        %2010 = vst.msk [vmem:[#allocation3 + $0x14] sm:$0x1] %vm2005, 0
        %2011 = vst.msk [vmem:[#allocation3 + $0x18] sm:$0xf] %vm375, 0
        %2012 = vst.msk [vmem:[#allocation3 + $0x1c] sm:$0x1] %vm2005, 0
        %2013 = vst.msk [vmem:[#allocation3 + $0x20] sm:$0xf] %vm375, 0
        %2014 = vst.msk [vmem:[#allocation3 + $0x24] sm:$0x1] %vm2005, 0
        %2015 = vst.msk [vmem:[#allocation3 + $0x28] sm:$0xf] %vm375, 0
        %2016 = vst.msk [vmem:[#allocation3 + $0x2c] sm:$0x1] %vm2005, 0
        %2017 = vst.msk [vmem:[#allocation3 + $0x30] sm:$0xf] %vm375, 0
        %2018 = vst.msk [vmem:[#allocation3 + $0x34] sm:$0x1] %vm2005, 0
        %2019 = vst.msk [vmem:[#allocation3 + $0x38] sm:$0xf] %vm375, 0
        %2020 = vst.msk [vmem:[#allocation3 + $0x3c] sm:$0x1] %vm2005, 0
        %2021 = vst.msk [vmem:[#allocation3] sm:$0xf] %vm389, 0
        %vm2022 = vcmask 139400
        %2023 = vst.msk [vmem:[#allocation3 + $0x4] sm:$0x1] %vm2022, 0
        %2024 = vst.msk [vmem:[#allocation3 + $0x8] sm:$0xf] %vm389, 0
        %2025 = vst.msk [vmem:[#allocation3 + $0xc] sm:$0x1] %vm2022, 0
        %2026 = vst.msk [vmem:[#allocation3 + $0x10] sm:$0xf] %vm389, 0
        %2027 = vst.msk [vmem:[#allocation3 + $0x14] sm:$0x1] %vm2022, 0
        %2028 = vst.msk [vmem:[#allocation3 + $0x18] sm:$0xf] %vm389, 0
        %2029 = vst.msk [vmem:[#allocation3 + $0x1c] sm:$0x1] %vm2022, 0
        %2030 = vst.msk [vmem:[#allocation3 + $0x20] sm:$0xf] %vm389, 0
        %2031 = vst.msk [vmem:[#allocation3 + $0x24] sm:$0x1] %vm2022, 0
        %2032 = vst.msk [vmem:[#allocation3 + $0x28] sm:$0xf] %vm389, 0
        %2033 = vst.msk [vmem:[#allocation3 + $0x2c] sm:$0x1] %vm2022, 0
        %2034 = vst.msk [vmem:[#allocation3 + $0x30] sm:$0xf] %vm389, 0
        %2035 = vst.msk [vmem:[#allocation3 + $0x34] sm:$0x1] %vm2022, 0
        %2036 = vst.msk [vmem:[#allocation3 + $0x38] sm:$0xf] %vm389, 0
        %2037 = vst.msk [vmem:[#allocation3 + $0x3c] sm:$0x1] %vm2022, 0
        %v2038 = vld [vmem:[#allocation3] sm:$0xf]
        %v2039 = vld [vmem:[#allocation3 + $0x4] sm:$0x1]
        %v2040 = vld [vmem:[#allocation3 + $0x8] sm:$0xf]
        %v2041 = vld [vmem:[#allocation3 + $0xc] sm:$0x1]
        %v2042 = vld [vmem:[#allocation3 + $0x10] sm:$0xf]
        %v2043 = vld [vmem:[#allocation3 + $0x14] sm:$0x1]
        %v2044 = vld [vmem:[#allocation3 + $0x18] sm:$0xf]
        %v2045 = vld [vmem:[#allocation3 + $0x1c] sm:$0x1]
        %v2046 = vld [vmem:[#allocation3 + $0x20] sm:$0xf]
        %v2047 = vld [vmem:[#allocation3 + $0x24] sm:$0x1]
        %v2048 = vld [vmem:[#allocation3 + $0x28] sm:$0xf]
        %v2049 = vld [vmem:[#allocation3 + $0x2c] sm:$0x1]
        %v2050 = vld [vmem:[#allocation3 + $0x30] sm:$0xf]
        %v2051 = vld [vmem:[#allocation3 + $0x34] sm:$0x1]
        %v2052 = vld [vmem:[#allocation3 + $0x38] sm:$0xf]
        %v2053 = vld [vmem:[#allocation3 + $0x3c] sm:$0x1]
        %2062 = vrot.lane.b32.xlu0 %v2038, 127
        %v2063 = vpop.permute.xlu0 %2062
        %2064 = vrot.lane.b32.xlu0 %v2040, 127
        %v2065 = vpop.permute.xlu0 %2064
        %2066 = vrot.lane.b32.xlu0 %v2042, 127
        %v2067 = vpop.permute.xlu0 %2066
        %2068 = vrot.lane.b32.xlu0 %v2044, 127
        %v2069 = vpop.permute.xlu0 %2068
        %2070 = vrot.lane.b32.xlu0 %v2046, 127
        %v2071 = vpop.permute.xlu0 %2070
        %2072 = vrot.lane.b32.xlu0 %v2048, 127
        %v2073 = vpop.permute.xlu0 %2072
        %2074 = vrot.lane.b32.xlu0 %v2050, 127
        %v2075 = vpop.permute.xlu0 %2074
        %2076 = vrot.lane.b32.xlu0 %v2052, 127
        %v2077 = vpop.permute.xlu0 %2076
        %2086 = vrot.lane.b32.xlu0 %v2038, 126
        %v2087 = vpop.permute.xlu0 %2086
        %2088 = vrot.lane.b32.xlu0 %v2040, 126
        %v2089 = vpop.permute.xlu0 %2088
        %2090 = vrot.lane.b32.xlu0 %v2042, 126
        %v2091 = vpop.permute.xlu0 %2090
        %2092 = vrot.lane.b32.xlu0 %v2044, 126
        %v2093 = vpop.permute.xlu0 %2092
        %2094 = vrot.lane.b32.xlu0 %v2046, 126
        %v2095 = vpop.permute.xlu0 %2094
        %2096 = vrot.lane.b32.xlu0 %v2048, 126
        %v2097 = vpop.permute.xlu0 %2096
        %2098 = vrot.lane.b32.xlu0 %v2050, 126
        %v2099 = vpop.permute.xlu0 %2098
        %2100 = vrot.lane.b32.xlu0 %v2052, 126
        %v2101 = vpop.permute.xlu0 %2100
        %v2111 = vshrl.u32 %v2038, 16
        %v2113 = vrot.slane %v2111, 4
        %v2114 = vshll.u32 %v2038, 16
        %v2116 = vrot.slane %v2114, 5
        %v2117 = vor.u32 %v2113, %v2116
        %v2118 = vrot.slane %v2117, 4
        %v2120 = vshll.u32 %v2039, 16
        %v2122 = vrot.slane %v2120, 5
        %v2123 = vsel %vm473, %v2118, %v2122
        %v2125 = vshrl.u32 %v2040, 16
        %v2127 = vrot.slane %v2125, 4
        %v2128 = vshll.u32 %v2040, 16
        %v2130 = vrot.slane %v2128, 5
        %v2131 = vor.u32 %v2127, %v2130
        %v2132 = vrot.slane %v2131, 4
        %v2134 = vshll.u32 %v2041, 16
        %v2136 = vrot.slane %v2134, 5
        %v2137 = vsel %vm473, %v2132, %v2136
        %v2139 = vshrl.u32 %v2042, 16
        %v2141 = vrot.slane %v2139, 4
        %v2142 = vshll.u32 %v2042, 16
        %v2144 = vrot.slane %v2142, 5
        %v2145 = vor.u32 %v2141, %v2144
        %v2146 = vrot.slane %v2145, 4
        %v2148 = vshll.u32 %v2043, 16
        %v2150 = vrot.slane %v2148, 5
        %v2151 = vsel %vm473, %v2146, %v2150
        %v2153 = vshrl.u32 %v2044, 16
        %v2155 = vrot.slane %v2153, 4
        %v2156 = vshll.u32 %v2044, 16
        %v2158 = vrot.slane %v2156, 5
        %v2159 = vor.u32 %v2155, %v2158
        %v2160 = vrot.slane %v2159, 4
        %v2162 = vshll.u32 %v2045, 16
        %v2164 = vrot.slane %v2162, 5
        %v2165 = vsel %vm473, %v2160, %v2164
        %v2167 = vshrl.u32 %v2046, 16
        %v2169 = vrot.slane %v2167, 4
        %v2170 = vshll.u32 %v2046, 16
        %v2172 = vrot.slane %v2170, 5
        %v2173 = vor.u32 %v2169, %v2172
        %v2174 = vrot.slane %v2173, 4
        %v2176 = vshll.u32 %v2047, 16
        %v2178 = vrot.slane %v2176, 5
        %v2179 = vsel %vm473, %v2174, %v2178
        %v2181 = vshrl.u32 %v2048, 16
        %v2183 = vrot.slane %v2181, 4
        %v2184 = vshll.u32 %v2048, 16
        %v2186 = vrot.slane %v2184, 5
        %v2187 = vor.u32 %v2183, %v2186
        %v2188 = vrot.slane %v2187, 4
        %v2190 = vshll.u32 %v2049, 16
        %v2192 = vrot.slane %v2190, 5
        %v2193 = vsel %vm473, %v2188, %v2192
        %v2195 = vshrl.u32 %v2050, 16
        %v2197 = vrot.slane %v2195, 4
        %v2198 = vshll.u32 %v2050, 16
        %v2200 = vrot.slane %v2198, 5
        %v2201 = vor.u32 %v2197, %v2200
        %v2202 = vrot.slane %v2201, 4
        %v2204 = vshll.u32 %v2051, 16
        %v2206 = vrot.slane %v2204, 5
        %v2207 = vsel %vm473, %v2202, %v2206
        %v2209 = vshrl.u32 %v2052, 16
        %v2211 = vrot.slane %v2209, 4
        %v2212 = vshll.u32 %v2052, 16
        %v2214 = vrot.slane %v2212, 5
        %v2215 = vor.u32 %v2211, %v2214
        %v2216 = vrot.slane %v2215, 4
        %v2218 = vshll.u32 %v2053, 16
        %v2220 = vrot.slane %v2218, 5
        %v2221 = vsel %vm473, %v2216, %v2220
        %2230 = vrot.lane.b32.xlu0 %v2123, 127
        %v2231 = vpop.permute.xlu0 %2230
        %2232 = vrot.lane.b32.xlu0 %v2137, 127
        %v2233 = vpop.permute.xlu0 %2232
        %2234 = vrot.lane.b32.xlu0 %v2151, 127
        %v2235 = vpop.permute.xlu0 %2234
        %2236 = vrot.lane.b32.xlu0 %v2165, 127
        %v2237 = vpop.permute.xlu0 %2236
        %2238 = vrot.lane.b32.xlu0 %v2179, 127
        %v2239 = vpop.permute.xlu0 %2238
        %2240 = vrot.lane.b32.xlu0 %v2193, 127
        %v2241 = vpop.permute.xlu0 %2240
        %2242 = vrot.lane.b32.xlu0 %v2207, 127
        %v2243 = vpop.permute.xlu0 %2242
        %2244 = vrot.lane.b32.xlu0 %v2221, 127
        %v2245 = vpop.permute.xlu0 %2244
        %2254 = vrot.lane.b32.xlu0 %v2123, 126
        %v2255 = vpop.permute.xlu0 %2254
        %2256 = vrot.lane.b32.xlu0 %v2137, 126
        %v2257 = vpop.permute.xlu0 %2256
        %2258 = vrot.lane.b32.xlu0 %v2151, 126
        %v2259 = vpop.permute.xlu0 %2258
        %2260 = vrot.lane.b32.xlu0 %v2165, 126
        %v2261 = vpop.permute.xlu0 %2260
        %2262 = vrot.lane.b32.xlu0 %v2179, 126
        %v2263 = vpop.permute.xlu0 %2262
        %2264 = vrot.lane.b32.xlu0 %v2193, 126
        %v2265 = vpop.permute.xlu0 %2264
        %2266 = vrot.lane.b32.xlu0 %v2207, 126
        %v2267 = vpop.permute.xlu0 %2266
        %2268 = vrot.lane.b32.xlu0 %v2221, 126
        %v2269 = vpop.permute.xlu0 %2268
        %v2286 = vrot.slane %v2038, 5
        %v2287 = vrot.slane %v2286, 4
        %v2288 = vrot.slane %v2039, 5
        %v2289 = vsel %vm608, %v2287, %v2288
        %v2290 = vrot.slane %v2040, 5
        %v2291 = vrot.slane %v2290, 4
        %v2292 = vrot.slane %v2041, 5
        %v2293 = vsel %vm608, %v2291, %v2292
        %v2294 = vrot.slane %v2042, 5
        %v2295 = vrot.slane %v2294, 4
        %v2296 = vrot.slane %v2043, 5
        %v2297 = vsel %vm608, %v2295, %v2296
        %v2298 = vrot.slane %v2044, 5
        %v2299 = vrot.slane %v2298, 4
        %v2300 = vrot.slane %v2045, 5
        %v2301 = vsel %vm608, %v2299, %v2300
        %v2302 = vrot.slane %v2046, 5
        %v2303 = vrot.slane %v2302, 4
        %v2304 = vrot.slane %v2047, 5
        %v2305 = vsel %vm608, %v2303, %v2304
        %v2306 = vrot.slane %v2048, 5
        %v2307 = vrot.slane %v2306, 4
        %v2308 = vrot.slane %v2049, 5
        %v2309 = vsel %vm608, %v2307, %v2308
        %v2310 = vrot.slane %v2050, 5
        %v2311 = vrot.slane %v2310, 4
        %v2312 = vrot.slane %v2051, 5
        %v2313 = vsel %vm608, %v2311, %v2312
        %v2314 = vrot.slane %v2052, 5
        %v2315 = vrot.slane %v2314, 4
        %v2316 = vrot.slane %v2053, 5
        %v2317 = vsel %vm608, %v2315, %v2316
        %2326 = vrot.lane.b32.xlu0 %v2289, 127
        %v2327 = vpop.permute.xlu0 %2326
        %2328 = vrot.lane.b32.xlu0 %v2293, 127
        %v2329 = vpop.permute.xlu0 %2328
        %2330 = vrot.lane.b32.xlu0 %v2297, 127
        %v2331 = vpop.permute.xlu0 %2330
        %2332 = vrot.lane.b32.xlu0 %v2301, 127
        %v2333 = vpop.permute.xlu0 %2332
        %2334 = vrot.lane.b32.xlu0 %v2305, 127
        %v2335 = vpop.permute.xlu0 %2334
        %2336 = vrot.lane.b32.xlu0 %v2309, 127
        %v2337 = vpop.permute.xlu0 %2336
        %2338 = vrot.lane.b32.xlu0 %v2313, 127
        %v2339 = vpop.permute.xlu0 %2338
        %2340 = vrot.lane.b32.xlu0 %v2317, 127
        %v2341 = vpop.permute.xlu0 %2340
        %2350 = vrot.lane.b32.xlu0 %v2289, 126
        %v2351 = vpop.permute.xlu0 %2350
        %2352 = vrot.lane.b32.xlu0 %v2293, 126
        %v2353 = vpop.permute.xlu0 %2352
        %2354 = vrot.lane.b32.xlu0 %v2297, 126
        %v2355 = vpop.permute.xlu0 %2354
        %2356 = vrot.lane.b32.xlu0 %v2301, 126
        %v2357 = vpop.permute.xlu0 %2356
        %2358 = vrot.lane.b32.xlu0 %v2305, 126
        %v2359 = vpop.permute.xlu0 %2358
        %2360 = vrot.lane.b32.xlu0 %v2309, 126
        %v2361 = vpop.permute.xlu0 %2360
        %2362 = vrot.lane.b32.xlu0 %v2313, 126
        %v2363 = vpop.permute.xlu0 %2362
        %2364 = vrot.lane.b32.xlu0 %v2317, 126
        %v2365 = vpop.permute.xlu0 %2364
        %v2374 = vcombine.low %v2038, %v2046
        %v2376 = vunpack.c.l.s4 1983009808
        %v2377 = vunpack.c.0.s8 %v2376
        %v2378 = vlaneseq
        %v2379 = vshrl.u32 %v2378, 7
        %v2380 = vsub.s32 %v2377, %v2379
        %v2381 = vrot.slane %v2374, %v2380
        %v2382 = vcombine.low %v2042, %v2050
        %v2384 = vunpack.c.l.s4 1983009808
        %v2385 = vunpack.c.0.s8 %v2384
        %v2386 = vlaneseq
        %v2387 = vshrl.u32 %v2386, 7
        %v2388 = vsub.s32 %v2385, %v2387
        %v2389 = vrot.slane %v2382, %v2388
        %v2390 = vcombine.low %v2381, %v2389
        %v2391 = vcombine.high %v2381, %v2389
        %v2393 = vunpack.c.l.s4 1934713408
        %v2394 = vunpack.c.0.s8 %v2393
        %v2395 = vlaneseq
        %v2396 = vshrl.u32 %v2395, 7
        %v2397 = vsub.s32 %v2394, %v2396
        %v2398 = vrot.slane %v2390, %v2397
        %v2400 = vunpack.c.l.s4 1934713408
        %v2401 = vunpack.c.0.s8 %v2400
        %v2402 = vlaneseq
        %v2403 = vshrl.u32 %v2402, 7
        %v2404 = vsub.s32 %v2401, %v2403
        %v2405 = vrot.slane %v2391, %v2404
        %v2406 = vcombine.high %v2398, 0
        %v2407 = vcombine.high %v2405, 0
        %v2408 = vcombine.low %v2040, %v2048
        %v2410 = vunpack.c.l.s4 1983009808
        %v2411 = vunpack.c.0.s8 %v2410
        %v2412 = vlaneseq
        %v2413 = vshrl.u32 %v2412, 7
        %v2414 = vsub.s32 %v2411, %v2413
        %v2415 = vrot.slane %v2408, %v2414
        %v2416 = vcombine.low %v2044, %v2052
        %v2418 = vunpack.c.l.s4 1983009808
        %v2419 = vunpack.c.0.s8 %v2418
        %v2420 = vlaneseq
        %v2421 = vshrl.u32 %v2420, 7
        %v2422 = vsub.s32 %v2419, %v2421
        %v2423 = vrot.slane %v2416, %v2422
        %v2424 = vcombine.low %v2415, %v2423
        %v2425 = vcombine.high %v2415, %v2423
        %v2427 = vunpack.c.l.s4 1934713408
        %v2428 = vunpack.c.0.s8 %v2427
        %v2429 = vlaneseq
        %v2430 = vshrl.u32 %v2429, 7
        %v2431 = vsub.s32 %v2428, %v2430
        %v2432 = vrot.slane %v2424, %v2431
        %v2434 = vunpack.c.l.s4 1934713408
        %v2435 = vunpack.c.0.s8 %v2434
        %v2436 = vlaneseq
        %v2437 = vshrl.u32 %v2436, 7
        %v2438 = vsub.s32 %v2435, %v2437
        %v2439 = vrot.slane %v2425, %v2438
        %v2440 = vcombine.high %v2432, 0
        %v2441 = vcombine.high %v2439, 0
        %v2442 = vcombine.low %v2063, %v2071
        %v2444 = vunpack.c.l.s4 1983009808
        %v2445 = vunpack.c.0.s8 %v2444
        %v2446 = vlaneseq
        %v2447 = vshrl.u32 %v2446, 7
        %v2448 = vsub.s32 %v2445, %v2447
        %v2449 = vrot.slane %v2442, %v2448
        %v2450 = vcombine.low %v2067, %v2075
        %v2452 = vunpack.c.l.s4 1983009808
        %v2453 = vunpack.c.0.s8 %v2452
        %v2454 = vlaneseq
        %v2455 = vshrl.u32 %v2454, 7
        %v2456 = vsub.s32 %v2453, %v2455
        %v2457 = vrot.slane %v2450, %v2456
        %v2458 = vcombine.low %v2449, %v2457
        %v2459 = vcombine.high %v2449, %v2457
        %v2461 = vunpack.c.l.s4 1934713408
        %v2462 = vunpack.c.0.s8 %v2461
        %v2463 = vlaneseq
        %v2464 = vshrl.u32 %v2463, 7
        %v2465 = vsub.s32 %v2462, %v2464
        %v2466 = vrot.slane %v2458, %v2465
        %v2468 = vunpack.c.l.s4 1934713408
        %v2469 = vunpack.c.0.s8 %v2468
        %v2470 = vlaneseq
        %v2471 = vshrl.u32 %v2470, 7
        %v2472 = vsub.s32 %v2469, %v2471
        %v2473 = vrot.slane %v2459, %v2472
        %v2474 = vcombine.high %v2466, 0
        %v2475 = vcombine.high %v2473, 0
        %v2476 = vcombine.low %v2065, %v2073
        %v2478 = vunpack.c.l.s4 1983009808
        %v2479 = vunpack.c.0.s8 %v2478
        %v2480 = vlaneseq
        %v2481 = vshrl.u32 %v2480, 7
        %v2482 = vsub.s32 %v2479, %v2481
        %v2483 = vrot.slane %v2476, %v2482
        %v2484 = vcombine.low %v2069, %v2077
        %v2486 = vunpack.c.l.s4 1983009808
        %v2487 = vunpack.c.0.s8 %v2486
        %v2488 = vlaneseq
        %v2489 = vshrl.u32 %v2488, 7
        %v2490 = vsub.s32 %v2487, %v2489
        %v2491 = vrot.slane %v2484, %v2490
        %v2492 = vcombine.low %v2483, %v2491
        %v2493 = vcombine.high %v2483, %v2491
        %v2495 = vunpack.c.l.s4 1934713408
        %v2496 = vunpack.c.0.s8 %v2495
        %v2497 = vlaneseq
        %v2498 = vshrl.u32 %v2497, 7
        %v2499 = vsub.s32 %v2496, %v2498
        %v2500 = vrot.slane %v2492, %v2499
        %v2502 = vunpack.c.l.s4 1934713408
        %v2503 = vunpack.c.0.s8 %v2502
        %v2504 = vlaneseq
        %v2505 = vshrl.u32 %v2504, 7
        %v2506 = vsub.s32 %v2503, %v2505
        %v2507 = vrot.slane %v2493, %v2506
        %v2508 = vcombine.high %v2500, 0
        %v2509 = vcombine.high %v2507, 0
        %v2510 = vcombine.low %v2087, %v2095
        %v2512 = vunpack.c.l.s4 1983009808
        %v2513 = vunpack.c.0.s8 %v2512
        %v2514 = vlaneseq
        %v2515 = vshrl.u32 %v2514, 7
        %v2516 = vsub.s32 %v2513, %v2515
        %v2517 = vrot.slane %v2510, %v2516
        %v2518 = vcombine.low %v2091, %v2099
        %v2520 = vunpack.c.l.s4 1983009808
        %v2521 = vunpack.c.0.s8 %v2520
        %v2522 = vlaneseq
        %v2523 = vshrl.u32 %v2522, 7
        %v2524 = vsub.s32 %v2521, %v2523
        %v2525 = vrot.slane %v2518, %v2524
        %v2526 = vcombine.low %v2517, %v2525
        %v2527 = vcombine.high %v2517, %v2525
        %v2529 = vunpack.c.l.s4 1934713408
        %v2530 = vunpack.c.0.s8 %v2529
        %v2531 = vlaneseq
        %v2532 = vshrl.u32 %v2531, 7
        %v2533 = vsub.s32 %v2530, %v2532
        %v2534 = vrot.slane %v2526, %v2533
        %v2536 = vunpack.c.l.s4 1934713408
        %v2537 = vunpack.c.0.s8 %v2536
        %v2538 = vlaneseq
        %v2539 = vshrl.u32 %v2538, 7
        %v2540 = vsub.s32 %v2537, %v2539
        %v2541 = vrot.slane %v2527, %v2540
        %v2542 = vcombine.high %v2534, 0
        %v2543 = vcombine.high %v2541, 0
        %v2544 = vcombine.low %v2089, %v2097
        %v2546 = vunpack.c.l.s4 1983009808
        %v2547 = vunpack.c.0.s8 %v2546
        %v2548 = vlaneseq
        %v2549 = vshrl.u32 %v2548, 7
        %v2550 = vsub.s32 %v2547, %v2549
        %v2551 = vrot.slane %v2544, %v2550
        %v2552 = vcombine.low %v2093, %v2101
        %v2554 = vunpack.c.l.s4 1983009808
        %v2555 = vunpack.c.0.s8 %v2554
        %v2556 = vlaneseq
        %v2557 = vshrl.u32 %v2556, 7
        %v2558 = vsub.s32 %v2555, %v2557
        %v2559 = vrot.slane %v2552, %v2558
        %v2560 = vcombine.low %v2551, %v2559
        %v2561 = vcombine.high %v2551, %v2559
        %v2563 = vunpack.c.l.s4 1934713408
        %v2564 = vunpack.c.0.s8 %v2563
        %v2565 = vlaneseq
        %v2566 = vshrl.u32 %v2565, 7
        %v2567 = vsub.s32 %v2564, %v2566
        %v2568 = vrot.slane %v2560, %v2567
        %v2570 = vunpack.c.l.s4 1934713408
        %v2571 = vunpack.c.0.s8 %v2570
        %v2572 = vlaneseq
        %v2573 = vshrl.u32 %v2572, 7
        %v2574 = vsub.s32 %v2571, %v2573
        %v2575 = vrot.slane %v2561, %v2574
        %v2576 = vcombine.high %v2568, 0
        %v2577 = vcombine.high %v2575, 0
        %v2578 = vcombine.low %v2123, %v2179
        %v2580 = vunpack.c.l.s4 1983009808
        %v2581 = vunpack.c.0.s8 %v2580
        %v2582 = vlaneseq
        %v2583 = vshrl.u32 %v2582, 7
        %v2584 = vsub.s32 %v2581, %v2583
        %v2585 = vrot.slane %v2578, %v2584
        %v2586 = vcombine.low %v2151, %v2207
        %v2588 = vunpack.c.l.s4 1983009808
        %v2589 = vunpack.c.0.s8 %v2588
        %v2590 = vlaneseq
        %v2591 = vshrl.u32 %v2590, 7
        %v2592 = vsub.s32 %v2589, %v2591
        %v2593 = vrot.slane %v2586, %v2592
        %v2594 = vcombine.low %v2585, %v2593
        %v2595 = vcombine.high %v2585, %v2593
        %v2597 = vunpack.c.l.s4 1934713408
        %v2598 = vunpack.c.0.s8 %v2597
        %v2599 = vlaneseq
        %v2600 = vshrl.u32 %v2599, 7
        %v2601 = vsub.s32 %v2598, %v2600
        %v2602 = vrot.slane %v2594, %v2601
        %v2604 = vunpack.c.l.s4 1934713408
        %v2605 = vunpack.c.0.s8 %v2604
        %v2606 = vlaneseq
        %v2607 = vshrl.u32 %v2606, 7
        %v2608 = vsub.s32 %v2605, %v2607
        %v2609 = vrot.slane %v2595, %v2608
        %v2610 = vcombine.high %v2602, 0
        %v2611 = vcombine.high %v2609, 0
        %v2612 = vcombine.low %v2137, %v2193
        %v2614 = vunpack.c.l.s4 1983009808
        %v2615 = vunpack.c.0.s8 %v2614
        %v2616 = vlaneseq
        %v2617 = vshrl.u32 %v2616, 7
        %v2618 = vsub.s32 %v2615, %v2617
        %v2619 = vrot.slane %v2612, %v2618
        %v2620 = vcombine.low %v2165, %v2221
        %v2622 = vunpack.c.l.s4 1983009808
        %v2623 = vunpack.c.0.s8 %v2622
        %v2624 = vlaneseq
        %v2625 = vshrl.u32 %v2624, 7
        %v2626 = vsub.s32 %v2623, %v2625
        %v2627 = vrot.slane %v2620, %v2626
        %v2628 = vcombine.low %v2619, %v2627
        %v2629 = vcombine.high %v2619, %v2627
        %v2631 = vunpack.c.l.s4 1934713408
        %v2632 = vunpack.c.0.s8 %v2631
        %v2633 = vlaneseq
        %v2634 = vshrl.u32 %v2633, 7
        %v2635 = vsub.s32 %v2632, %v2634
        %v2636 = vrot.slane %v2628, %v2635
        %v2638 = vunpack.c.l.s4 1934713408
        %v2639 = vunpack.c.0.s8 %v2638
        %v2640 = vlaneseq
        %v2641 = vshrl.u32 %v2640, 7
        %v2642 = vsub.s32 %v2639, %v2641
        %v2643 = vrot.slane %v2629, %v2642
        %v2644 = vcombine.high %v2636, 0
        %v2645 = vcombine.high %v2643, 0
        %v2646 = vcombine.low %v2231, %v2239
        %v2648 = vunpack.c.l.s4 1983009808
        %v2649 = vunpack.c.0.s8 %v2648
        %v2650 = vlaneseq
        %v2651 = vshrl.u32 %v2650, 7
        %v2652 = vsub.s32 %v2649, %v2651
        %v2653 = vrot.slane %v2646, %v2652
        %v2654 = vcombine.low %v2235, %v2243
        %v2656 = vunpack.c.l.s4 1983009808
        %v2657 = vunpack.c.0.s8 %v2656
        %v2658 = vlaneseq
        %v2659 = vshrl.u32 %v2658, 7
        %v2660 = vsub.s32 %v2657, %v2659
        %v2661 = vrot.slane %v2654, %v2660
        %v2662 = vcombine.low %v2653, %v2661
        %v2663 = vcombine.high %v2653, %v2661
        %v2665 = vunpack.c.l.s4 1934713408
        %v2666 = vunpack.c.0.s8 %v2665
        %v2667 = vlaneseq
        %v2668 = vshrl.u32 %v2667, 7
        %v2669 = vsub.s32 %v2666, %v2668
        %v2670 = vrot.slane %v2662, %v2669
        %v2672 = vunpack.c.l.s4 1934713408
        %v2673 = vunpack.c.0.s8 %v2672
        %v2674 = vlaneseq
        %v2675 = vshrl.u32 %v2674, 7
        %v2676 = vsub.s32 %v2673, %v2675
        %v2677 = vrot.slane %v2663, %v2676
        %v2678 = vcombine.high %v2670, 0
        %v2679 = vcombine.high %v2677, 0
        %v2680 = vcombine.low %v2233, %v2241
        %v2682 = vunpack.c.l.s4 1983009808
        %v2683 = vunpack.c.0.s8 %v2682
        %v2684 = vlaneseq
        %v2685 = vshrl.u32 %v2684, 7
        %v2686 = vsub.s32 %v2683, %v2685
        %v2687 = vrot.slane %v2680, %v2686
        %v2688 = vcombine.low %v2237, %v2245
        %v2690 = vunpack.c.l.s4 1983009808
        %v2691 = vunpack.c.0.s8 %v2690
        %v2692 = vlaneseq
        %v2693 = vshrl.u32 %v2692, 7
        %v2694 = vsub.s32 %v2691, %v2693
        %v2695 = vrot.slane %v2688, %v2694
        %v2696 = vcombine.low %v2687, %v2695
        %v2697 = vcombine.high %v2687, %v2695
        %v2699 = vunpack.c.l.s4 1934713408
        %v2700 = vunpack.c.0.s8 %v2699
        %v2701 = vlaneseq
        %v2702 = vshrl.u32 %v2701, 7
        %v2703 = vsub.s32 %v2700, %v2702
        %v2704 = vrot.slane %v2696, %v2703
        %v2706 = vunpack.c.l.s4 1934713408
        %v2707 = vunpack.c.0.s8 %v2706
        %v2708 = vlaneseq
        %v2709 = vshrl.u32 %v2708, 7
        %v2710 = vsub.s32 %v2707, %v2709
        %v2711 = vrot.slane %v2697, %v2710
        %v2712 = vcombine.high %v2704, 0
        %v2713 = vcombine.high %v2711, 0
        %v2714 = vcombine.low %v2255, %v2263
        %v2716 = vunpack.c.l.s4 1983009808
        %v2717 = vunpack.c.0.s8 %v2716
        %v2718 = vlaneseq
        %v2719 = vshrl.u32 %v2718, 7
        %v2720 = vsub.s32 %v2717, %v2719
        %v2721 = vrot.slane %v2714, %v2720
        %v2722 = vcombine.low %v2259, %v2267
        %v2724 = vunpack.c.l.s4 1983009808
        %v2725 = vunpack.c.0.s8 %v2724
        %v2726 = vlaneseq
        %v2727 = vshrl.u32 %v2726, 7
        %v2728 = vsub.s32 %v2725, %v2727
        %v2729 = vrot.slane %v2722, %v2728
        %v2730 = vcombine.low %v2721, %v2729
        %v2731 = vcombine.high %v2721, %v2729
        %v2733 = vunpack.c.l.s4 1934713408
        %v2734 = vunpack.c.0.s8 %v2733
        %v2735 = vlaneseq
        %v2736 = vshrl.u32 %v2735, 7
        %v2737 = vsub.s32 %v2734, %v2736
        %v2738 = vrot.slane %v2730, %v2737
        %v2740 = vunpack.c.l.s4 1934713408
        %v2741 = vunpack.c.0.s8 %v2740
        %v2742 = vlaneseq
        %v2743 = vshrl.u32 %v2742, 7
        %v2744 = vsub.s32 %v2741, %v2743
        %v2745 = vrot.slane %v2731, %v2744
        %v2746 = vcombine.high %v2738, 0
        %v2747 = vcombine.high %v2745, 0
        %v2748 = vcombine.low %v2257, %v2265
        %v2750 = vunpack.c.l.s4 1983009808
        %v2751 = vunpack.c.0.s8 %v2750
        %v2752 = vlaneseq
        %v2753 = vshrl.u32 %v2752, 7
        %v2754 = vsub.s32 %v2751, %v2753
        %v2755 = vrot.slane %v2748, %v2754
        %v2756 = vcombine.low %v2261, %v2269
        %v2758 = vunpack.c.l.s4 1983009808
        %v2759 = vunpack.c.0.s8 %v2758
        %v2760 = vlaneseq
        %v2761 = vshrl.u32 %v2760, 7
        %v2762 = vsub.s32 %v2759, %v2761
        %v2763 = vrot.slane %v2756, %v2762
        %v2764 = vcombine.low %v2755, %v2763
        %v2765 = vcombine.high %v2755, %v2763
        %v2767 = vunpack.c.l.s4 1934713408
        %v2768 = vunpack.c.0.s8 %v2767
        %v2769 = vlaneseq
        %v2770 = vshrl.u32 %v2769, 7
        %v2771 = vsub.s32 %v2768, %v2770
        %v2772 = vrot.slane %v2764, %v2771
        %v2774 = vunpack.c.l.s4 1934713408
        %v2775 = vunpack.c.0.s8 %v2774
        %v2776 = vlaneseq
        %v2777 = vshrl.u32 %v2776, 7
        %v2778 = vsub.s32 %v2775, %v2777
        %v2779 = vrot.slane %v2765, %v2778
        %v2780 = vcombine.high %v2772, 0
        %v2781 = vcombine.high %v2779, 0
        %v2782 = vcombine.low %v2289, %v2305
        %v2784 = vunpack.c.l.s4 1983009808
        %v2785 = vunpack.c.0.s8 %v2784
        %v2786 = vlaneseq
        %v2787 = vshrl.u32 %v2786, 7
        %v2788 = vsub.s32 %v2785, %v2787
        %v2789 = vrot.slane %v2782, %v2788
        %v2790 = vcombine.low %v2297, %v2313
        %v2792 = vunpack.c.l.s4 1983009808
        %v2793 = vunpack.c.0.s8 %v2792
        %v2794 = vlaneseq
        %v2795 = vshrl.u32 %v2794, 7
        %v2796 = vsub.s32 %v2793, %v2795
        %v2797 = vrot.slane %v2790, %v2796
        %v2798 = vcombine.low %v2789, %v2797
        %v2799 = vcombine.high %v2789, %v2797
        %v2801 = vunpack.c.l.s4 1934713408
        %v2802 = vunpack.c.0.s8 %v2801
        %v2803 = vlaneseq
        %v2804 = vshrl.u32 %v2803, 7
        %v2805 = vsub.s32 %v2802, %v2804
        %v2806 = vrot.slane %v2798, %v2805
        %v2808 = vunpack.c.l.s4 1934713408
        %v2809 = vunpack.c.0.s8 %v2808
        %v2810 = vlaneseq
        %v2811 = vshrl.u32 %v2810, 7
        %v2812 = vsub.s32 %v2809, %v2811
        %v2813 = vrot.slane %v2799, %v2812
        %v2814 = vcombine.high %v2806, 0
        %v2815 = vcombine.high %v2813, 0
        %v2816 = vcombine.low %v2293, %v2309
        %v2818 = vunpack.c.l.s4 1983009808
        %v2819 = vunpack.c.0.s8 %v2818
        %v2820 = vlaneseq
        %v2821 = vshrl.u32 %v2820, 7
        %v2822 = vsub.s32 %v2819, %v2821
        %v2823 = vrot.slane %v2816, %v2822
        %v2824 = vcombine.low %v2301, %v2317
        %v2826 = vunpack.c.l.s4 1983009808
        %v2827 = vunpack.c.0.s8 %v2826
        %v2828 = vlaneseq
        %v2829 = vshrl.u32 %v2828, 7
        %v2830 = vsub.s32 %v2827, %v2829
        %v2831 = vrot.slane %v2824, %v2830
        %v2832 = vcombine.low %v2823, %v2831
        %v2833 = vcombine.high %v2823, %v2831
        %v2835 = vunpack.c.l.s4 1934713408
        %v2836 = vunpack.c.0.s8 %v2835
        %v2837 = vlaneseq
        %v2838 = vshrl.u32 %v2837, 7
        %v2839 = vsub.s32 %v2836, %v2838
        %v2840 = vrot.slane %v2832, %v2839
        %v2842 = vunpack.c.l.s4 1934713408
        %v2843 = vunpack.c.0.s8 %v2842
        %v2844 = vlaneseq
        %v2845 = vshrl.u32 %v2844, 7
        %v2846 = vsub.s32 %v2843, %v2845
        %v2847 = vrot.slane %v2833, %v2846
        %v2848 = vcombine.high %v2840, 0
        %v2849 = vcombine.high %v2847, 0
        %v2850 = vcombine.low %v2327, %v2335
        %v2852 = vunpack.c.l.s4 1983009808
        %v2853 = vunpack.c.0.s8 %v2852
        %v2854 = vlaneseq
        %v2855 = vshrl.u32 %v2854, 7
        %v2856 = vsub.s32 %v2853, %v2855
        %v2857 = vrot.slane %v2850, %v2856
        %v2858 = vcombine.low %v2331, %v2339
        %v2860 = vunpack.c.l.s4 1983009808
        %v2861 = vunpack.c.0.s8 %v2860
        %v2862 = vlaneseq
        %v2863 = vshrl.u32 %v2862, 7
        %v2864 = vsub.s32 %v2861, %v2863
        %v2865 = vrot.slane %v2858, %v2864
        %v2866 = vcombine.low %v2857, %v2865
        %v2867 = vcombine.high %v2857, %v2865
        %v2869 = vunpack.c.l.s4 1934713408
        %v2870 = vunpack.c.0.s8 %v2869
        %v2871 = vlaneseq
        %v2872 = vshrl.u32 %v2871, 7
        %v2873 = vsub.s32 %v2870, %v2872
        %v2874 = vrot.slane %v2866, %v2873
        %v2876 = vunpack.c.l.s4 1934713408
        %v2877 = vunpack.c.0.s8 %v2876
        %v2878 = vlaneseq
        %v2879 = vshrl.u32 %v2878, 7
        %v2880 = vsub.s32 %v2877, %v2879
        %v2881 = vrot.slane %v2867, %v2880
        %v2882 = vcombine.high %v2874, 0
        %v2883 = vcombine.high %v2881, 0
        %v2884 = vcombine.low %v2329, %v2337
        %v2886 = vunpack.c.l.s4 1983009808
        %v2887 = vunpack.c.0.s8 %v2886
        %v2888 = vlaneseq
        %v2889 = vshrl.u32 %v2888, 7
        %v2890 = vsub.s32 %v2887, %v2889
        %v2891 = vrot.slane %v2884, %v2890
        %v2892 = vcombine.low %v2333, %v2341
        %v2894 = vunpack.c.l.s4 1983009808
        %v2895 = vunpack.c.0.s8 %v2894
        %v2896 = vlaneseq
        %v2897 = vshrl.u32 %v2896, 7
        %v2898 = vsub.s32 %v2895, %v2897
        %v2899 = vrot.slane %v2892, %v2898
        %v2900 = vcombine.low %v2891, %v2899
        %v2901 = vcombine.high %v2891, %v2899
        %v2903 = vunpack.c.l.s4 1934713408
        %v2904 = vunpack.c.0.s8 %v2903
        %v2905 = vlaneseq
        %v2906 = vshrl.u32 %v2905, 7
        %v2907 = vsub.s32 %v2904, %v2906
        %v2908 = vrot.slane %v2900, %v2907
        %v2910 = vunpack.c.l.s4 1934713408
        %v2911 = vunpack.c.0.s8 %v2910
        %v2912 = vlaneseq
        %v2913 = vshrl.u32 %v2912, 7
        %v2914 = vsub.s32 %v2911, %v2913
        %v2915 = vrot.slane %v2901, %v2914
        %v2916 = vcombine.high %v2908, 0
        %v2917 = vcombine.high %v2915, 0
        %v2918 = vcombine.low %v2351, %v2359
        %v2920 = vunpack.c.l.s4 1983009808
        %v2921 = vunpack.c.0.s8 %v2920
        %v2922 = vlaneseq
        %v2923 = vshrl.u32 %v2922, 7
        %v2924 = vsub.s32 %v2921, %v2923
        %v2925 = vrot.slane %v2918, %v2924
        %v2926 = vcombine.low %v2355, %v2363
        %v2928 = vunpack.c.l.s4 1983009808
        %v2929 = vunpack.c.0.s8 %v2928
        %v2930 = vlaneseq
        %v2931 = vshrl.u32 %v2930, 7
        %v2932 = vsub.s32 %v2929, %v2931
        %v2933 = vrot.slane %v2926, %v2932
        %v2934 = vcombine.low %v2925, %v2933
        %v2935 = vcombine.high %v2925, %v2933
        %v2937 = vunpack.c.l.s4 1934713408
        %v2938 = vunpack.c.0.s8 %v2937
        %v2939 = vlaneseq
        %v2940 = vshrl.u32 %v2939, 7
        %v2941 = vsub.s32 %v2938, %v2940
        %v2942 = vrot.slane %v2934, %v2941
        %v2944 = vunpack.c.l.s4 1934713408
        %v2945 = vunpack.c.0.s8 %v2944
        %v2946 = vlaneseq
        %v2947 = vshrl.u32 %v2946, 7
        %v2948 = vsub.s32 %v2945, %v2947
        %v2949 = vrot.slane %v2935, %v2948
        %v2950 = vcombine.high %v2942, 0
        %v2951 = vcombine.high %v2949, 0
        %v2952 = vcombine.low %v2353, %v2361
        %v2954 = vunpack.c.l.s4 1983009808
        %v2955 = vunpack.c.0.s8 %v2954
        %v2956 = vlaneseq
        %v2957 = vshrl.u32 %v2956, 7
        %v2958 = vsub.s32 %v2955, %v2957
        %v2959 = vrot.slane %v2952, %v2958
        %v2960 = vcombine.low %v2357, %v2365
        %v2962 = vunpack.c.l.s4 1983009808
        %v2963 = vunpack.c.0.s8 %v2962
        %v2964 = vlaneseq
        %v2965 = vshrl.u32 %v2964, 7
        %v2966 = vsub.s32 %v2963, %v2965
        %v2967 = vrot.slane %v2960, %v2966
        %v2968 = vcombine.low %v2959, %v2967
        %v2969 = vcombine.high %v2959, %v2967
        %v2971 = vunpack.c.l.s4 1934713408
        %v2972 = vunpack.c.0.s8 %v2971
        %v2973 = vlaneseq
        %v2974 = vshrl.u32 %v2973, 7
        %v2975 = vsub.s32 %v2972, %v2974
        %v2976 = vrot.slane %v2968, %v2975
        %v2978 = vunpack.c.l.s4 1934713408
        %v2979 = vunpack.c.0.s8 %v2978
        %v2980 = vlaneseq
        %v2981 = vshrl.u32 %v2980, 7
        %v2982 = vsub.s32 %v2979, %v2981
        %v2983 = vrot.slane %v2969, %v2982
        %v2984 = vcombine.high %v2976, 0
        %v2985 = vcombine.high %v2983, 0
        %v2988 = vpack.i.b16 %v2432, %v2398
        %v2989 = vshrl.u32 %v2398, 16
        %v2990 = vshrl.u32 %v2432, 16
        %v2991 = vpack.i.b16 %v2990, %v2989
        %v2994 = vpack.i.b16 %v2440, %v2406
        %v2995 = vshrl.u32 %v2406, 16
        %v2996 = vshrl.u32 %v2440, 16
        %v2997 = vpack.i.b16 %v2996, %v2995
        %v3000 = vpack.i.b16 %v2439, %v2405
        %v3001 = vshrl.u32 %v2405, 16
        %v3002 = vshrl.u32 %v2439, 16
        %v3003 = vpack.i.b16 %v3002, %v3001
        %v3006 = vpack.i.b16 %v2441, %v2407
        %v3007 = vshrl.u32 %v2407, 16
        %v3008 = vshrl.u32 %v2441, 16
        %v3009 = vpack.i.b16 %v3008, %v3007
        %v3012 = vpack.i.b16 %v2500, %v2466
        %v3013 = vshrl.u32 %v2466, 16
        %v3014 = vshrl.u32 %v2500, 16
        %v3015 = vpack.i.b16 %v3014, %v3013
        %v3018 = vpack.i.b16 %v2508, %v2474
        %v3019 = vshrl.u32 %v2474, 16
        %v3020 = vshrl.u32 %v2508, 16
        %v3021 = vpack.i.b16 %v3020, %v3019
        %v3024 = vpack.i.b16 %v2507, %v2473
        %v3025 = vshrl.u32 %v2473, 16
        %v3026 = vshrl.u32 %v2507, 16
        %v3027 = vpack.i.b16 %v3026, %v3025
        %v3030 = vpack.i.b16 %v2509, %v2475
        %v3031 = vshrl.u32 %v2475, 16
        %v3032 = vshrl.u32 %v2509, 16
        %v3033 = vpack.i.b16 %v3032, %v3031
        %v3036 = vpack.i.b16 %v2568, %v2534
        %v3037 = vshrl.u32 %v2534, 16
        %v3038 = vshrl.u32 %v2568, 16
        %v3039 = vpack.i.b16 %v3038, %v3037
        %v3042 = vpack.i.b16 %v2576, %v2542
        %v3043 = vshrl.u32 %v2542, 16
        %v3044 = vshrl.u32 %v2576, 16
        %v3045 = vpack.i.b16 %v3044, %v3043
        %v3048 = vpack.i.b16 %v2575, %v2541
        %v3049 = vshrl.u32 %v2541, 16
        %v3050 = vshrl.u32 %v2575, 16
        %v3051 = vpack.i.b16 %v3050, %v3049
        %v3054 = vpack.i.b16 %v2577, %v2543
        %v3055 = vshrl.u32 %v2543, 16
        %v3056 = vshrl.u32 %v2577, 16
        %v3057 = vpack.i.b16 %v3056, %v3055
        %v3060 = vpack.i.b16 %v2636, %v2602
        %v3061 = vshrl.u32 %v2602, 16
        %v3062 = vshrl.u32 %v2636, 16
        %v3063 = vpack.i.b16 %v3062, %v3061
        %v3066 = vpack.i.b16 %v2644, %v2610
        %v3067 = vshrl.u32 %v2610, 16
        %v3068 = vshrl.u32 %v2644, 16
        %v3069 = vpack.i.b16 %v3068, %v3067
        %v3072 = vpack.i.b16 %v2643, %v2609
        %v3073 = vshrl.u32 %v2609, 16
        %v3074 = vshrl.u32 %v2643, 16
        %v3075 = vpack.i.b16 %v3074, %v3073
        %v3078 = vpack.i.b16 %v2645, %v2611
        %v3079 = vshrl.u32 %v2611, 16
        %v3080 = vshrl.u32 %v2645, 16
        %v3081 = vpack.i.b16 %v3080, %v3079
        %v3084 = vpack.i.b16 %v2704, %v2670
        %v3085 = vshrl.u32 %v2670, 16
        %v3086 = vshrl.u32 %v2704, 16
        %v3087 = vpack.i.b16 %v3086, %v3085
        %v3090 = vpack.i.b16 %v2712, %v2678
        %v3091 = vshrl.u32 %v2678, 16
        %v3092 = vshrl.u32 %v2712, 16
        %v3093 = vpack.i.b16 %v3092, %v3091
        %v3096 = vpack.i.b16 %v2711, %v2677
        %v3097 = vshrl.u32 %v2677, 16
        %v3098 = vshrl.u32 %v2711, 16
        %v3099 = vpack.i.b16 %v3098, %v3097
        %v3102 = vpack.i.b16 %v2713, %v2679
        %v3103 = vshrl.u32 %v2679, 16
        %v3104 = vshrl.u32 %v2713, 16
        %v3105 = vpack.i.b16 %v3104, %v3103
        %v3108 = vpack.i.b16 %v2772, %v2738
        %v3109 = vshrl.u32 %v2738, 16
        %v3110 = vshrl.u32 %v2772, 16
        %v3111 = vpack.i.b16 %v3110, %v3109
        %v3114 = vpack.i.b16 %v2780, %v2746
        %v3115 = vshrl.u32 %v2746, 16
        %v3116 = vshrl.u32 %v2780, 16
        %v3117 = vpack.i.b16 %v3116, %v3115
        %v3120 = vpack.i.b16 %v2779, %v2745
        %v3121 = vshrl.u32 %v2745, 16
        %v3122 = vshrl.u32 %v2779, 16
        %v3123 = vpack.i.b16 %v3122, %v3121
        %v3126 = vpack.i.b16 %v2781, %v2747
        %v3127 = vshrl.u32 %v2747, 16
        %v3128 = vshrl.u32 %v2781, 16
        %v3129 = vpack.i.b16 %v3128, %v3127
        %v3132 = vpack.i.b16 %v2840, %v2806
        %v3133 = vshrl.u32 %v2806, 16
        %v3134 = vshrl.u32 %v2840, 16
        %v3135 = vpack.i.b16 %v3134, %v3133
        %v3138 = vpack.i.b16 %v2848, %v2814
        %v3139 = vshrl.u32 %v2814, 16
        %v3140 = vshrl.u32 %v2848, 16
        %v3141 = vpack.i.b16 %v3140, %v3139
        %v3144 = vpack.i.b16 %v2847, %v2813
        %v3145 = vshrl.u32 %v2813, 16
        %v3146 = vshrl.u32 %v2847, 16
        %v3147 = vpack.i.b16 %v3146, %v3145
        %v3150 = vpack.i.b16 %v2849, %v2815
        %v3151 = vshrl.u32 %v2815, 16
        %v3152 = vshrl.u32 %v2849, 16
        %v3153 = vpack.i.b16 %v3152, %v3151
        %v3156 = vpack.i.b16 %v2908, %v2874
        %v3157 = vshrl.u32 %v2874, 16
        %v3158 = vshrl.u32 %v2908, 16
        %v3159 = vpack.i.b16 %v3158, %v3157
        %v3162 = vpack.i.b16 %v2916, %v2882
        %v3163 = vshrl.u32 %v2882, 16
        %v3164 = vshrl.u32 %v2916, 16
        %v3165 = vpack.i.b16 %v3164, %v3163
        %v3168 = vpack.i.b16 %v2915, %v2881
        %v3169 = vshrl.u32 %v2881, 16
        %v3170 = vshrl.u32 %v2915, 16
        %v3171 = vpack.i.b16 %v3170, %v3169
        %v3174 = vpack.i.b16 %v2917, %v2883
        %v3175 = vshrl.u32 %v2883, 16
        %v3176 = vshrl.u32 %v2917, 16
        %v3177 = vpack.i.b16 %v3176, %v3175
        %v3180 = vpack.i.b16 %v2976, %v2942
        %v3181 = vshrl.u32 %v2942, 16
        %v3182 = vshrl.u32 %v2976, 16
        %v3183 = vpack.i.b16 %v3182, %v3181
        %v3186 = vpack.i.b16 %v2984, %v2950
        %v3187 = vshrl.u32 %v2950, 16
        %v3188 = vshrl.u32 %v2984, 16
        %v3189 = vpack.i.b16 %v3188, %v3187
        %v3192 = vpack.i.b16 %v2983, %v2949
        %v3193 = vshrl.u32 %v2949, 16
        %v3194 = vshrl.u32 %v2983, 16
        %v3195 = vpack.i.b16 %v3194, %v3193
        %v3198 = vpack.i.b16 %v2985, %v2951
        %v3199 = vshrl.u32 %v2951, 16
        %v3200 = vshrl.u32 %v2985, 16
        %v3201 = vpack.i.b16 %v3200, %v3199
        %v3202 = vunpack.c.l.b16 %v2988
        %v3203 = vunpack.c.l.b16 %v3012
        %v3204 = vunpack.c.l.b16 %v3036
        %v3205 = vunpack.c.l.b16 %v3060
        %v3206 = vunpack.c.l.b16 %v3084
        %v3207 = vunpack.c.l.b16 %v3108
        %v3208 = vunpack.c.l.b16 %v3132
        %v3209 = vunpack.c.l.b16 %v3156
        %v3210 = vunpack.c.l.b16 %v3180
        %v3211 = vpack.c.b16 %v3203, %v3202
        %v3212 = vpack.c.b16 %v3205, %v3204
        %v3213 = vpack.c.b16 %v3207, %v3206
        %v3214 = vpack.c.b16 %v3209, %v3208
        %v3215 = vpack.c.b16 %v3210, %v3210
        %v3216 = vunpack.c.l.b16 %v2991
        %v3217 = vunpack.c.l.b16 %v3015
        %v3218 = vunpack.c.l.b16 %v3039
        %v3219 = vunpack.c.l.b16 %v3063
        %v3220 = vunpack.c.l.b16 %v3087
        %v3221 = vunpack.c.l.b16 %v3111
        %v3222 = vunpack.c.l.b16 %v3135
        %v3223 = vunpack.c.l.b16 %v3159
        %v3224 = vunpack.c.l.b16 %v3183
        %v3225 = vpack.c.b16 %v3217, %v3216
        %v3226 = vpack.c.b16 %v3219, %v3218
        %v3227 = vpack.c.b16 %v3221, %v3220
        %v3228 = vpack.c.b16 %v3223, %v3222
        %v3229 = vpack.c.b16 %v3224, %v3224
        %3230 = vrot.lane.b32.xlu0 %v3225, 16
        %v3231 = vpop.permute.xlu0 %3230
        %3232 = vrot.lane.b32.xlu0 %v3226, 16
        %v3233 = vpop.permute.xlu0 %3232
        %3234 = vrot.lane.b32.xlu0 %v3227, 16
        %v3235 = vpop.permute.xlu0 %3234
        %3236 = vrot.lane.b32.xlu0 %v3228, 16
        %v3237 = vpop.permute.xlu0 %3236
        %3238 = vrot.lane.b32.xlu0 %v3229, 16
        %v3239 = vpop.permute.xlu0 %3238
        %v3240 = vunpack.c.l.b16 %v2994
        %v3241 = vunpack.c.l.b16 %v3018
        %v3242 = vunpack.c.l.b16 %v3042
        %v3243 = vunpack.c.l.b16 %v3066
        %v3244 = vunpack.c.l.b16 %v3090
        %v3245 = vunpack.c.l.b16 %v3114
        %v3246 = vunpack.c.l.b16 %v3138
        %v3247 = vunpack.c.l.b16 %v3162
        %v3248 = vunpack.c.l.b16 %v3186
        %v3249 = vpack.c.b16 %v3241, %v3240
        %v3250 = vpack.c.b16 %v3243, %v3242
        %v3251 = vpack.c.b16 %v3245, %v3244
        %v3252 = vpack.c.b16 %v3247, %v3246
        %v3253 = vpack.c.b16 %v3248, %v3248
        %3254 = vrot.lane.b32.xlu0 %v3249, 32
        %v3255 = vpop.permute.xlu0 %3254
        %3256 = vrot.lane.b32.xlu0 %v3250, 32
        %v3257 = vpop.permute.xlu0 %3256
        %3258 = vrot.lane.b32.xlu0 %v3251, 32
        %v3259 = vpop.permute.xlu0 %3258
        %3260 = vrot.lane.b32.xlu0 %v3252, 32
        %v3261 = vpop.permute.xlu0 %3260
        %3262 = vrot.lane.b32.xlu0 %v3253, 32
        %v3263 = vpop.permute.xlu0 %3262
        %v3264 = vunpack.c.l.b16 %v2997
        %v3265 = vunpack.c.l.b16 %v3021
        %v3266 = vunpack.c.l.b16 %v3045
        %v3267 = vunpack.c.l.b16 %v3069
        %v3268 = vunpack.c.l.b16 %v3093
        %v3269 = vunpack.c.l.b16 %v3117
        %v3270 = vunpack.c.l.b16 %v3141
        %v3271 = vunpack.c.l.b16 %v3165
        %v3272 = vunpack.c.l.b16 %v3189
        %v3273 = vpack.c.b16 %v3265, %v3264
        %v3274 = vpack.c.b16 %v3267, %v3266
        %v3275 = vpack.c.b16 %v3269, %v3268
        %v3276 = vpack.c.b16 %v3271, %v3270
        %v3277 = vpack.c.b16 %v3272, %v3272
        %3278 = vrot.lane.b32.xlu0 %v3273, 48
        %v3279 = vpop.permute.xlu0 %3278
        %3280 = vrot.lane.b32.xlu0 %v3274, 48
        %v3281 = vpop.permute.xlu0 %3280
        %3282 = vrot.lane.b32.xlu0 %v3275, 48
        %v3283 = vpop.permute.xlu0 %3282
        %3284 = vrot.lane.b32.xlu0 %v3276, 48
        %v3285 = vpop.permute.xlu0 %3284
        %3286 = vrot.lane.b32.xlu0 %v3277, 48
        %v3287 = vpop.permute.xlu0 %3286
        %v3288 = vunpack.c.l.b16 %v3000
        %v3289 = vunpack.c.l.b16 %v3024
        %v3290 = vunpack.c.l.b16 %v3048
        %v3291 = vunpack.c.l.b16 %v3072
        %v3292 = vunpack.c.l.b16 %v3096
        %v3293 = vunpack.c.l.b16 %v3120
        %v3294 = vunpack.c.l.b16 %v3144
        %v3295 = vunpack.c.l.b16 %v3168
        %v3296 = vunpack.c.l.b16 %v3192
        %v3297 = vpack.c.b16 %v3289, %v3288
        %v3298 = vpack.c.b16 %v3291, %v3290
        %v3299 = vpack.c.b16 %v3293, %v3292
        %v3300 = vpack.c.b16 %v3295, %v3294
        %v3301 = vpack.c.b16 %v3296, %v3296
        %3302 = vrot.lane.b32.xlu0 %v3297, 64
        %v3303 = vpop.permute.xlu0 %3302
        %3304 = vrot.lane.b32.xlu0 %v3298, 64
        %v3305 = vpop.permute.xlu0 %3304
        %3306 = vrot.lane.b32.xlu0 %v3299, 64
        %v3307 = vpop.permute.xlu0 %3306
        %3308 = vrot.lane.b32.xlu0 %v3300, 64
        %v3309 = vpop.permute.xlu0 %3308
        %3310 = vrot.lane.b32.xlu0 %v3301, 64
        %v3311 = vpop.permute.xlu0 %3310
        %v3312 = vunpack.c.l.b16 %v3003
        %v3313 = vunpack.c.l.b16 %v3027
        %v3314 = vunpack.c.l.b16 %v3051
        %v3315 = vunpack.c.l.b16 %v3075
        %v3316 = vunpack.c.l.b16 %v3099
        %v3317 = vunpack.c.l.b16 %v3123
        %v3318 = vunpack.c.l.b16 %v3147
        %v3319 = vunpack.c.l.b16 %v3171
        %v3320 = vunpack.c.l.b16 %v3195
        %v3321 = vpack.c.b16 %v3313, %v3312
        %v3322 = vpack.c.b16 %v3315, %v3314
        %v3323 = vpack.c.b16 %v3317, %v3316
        %v3324 = vpack.c.b16 %v3319, %v3318
        %v3325 = vpack.c.b16 %v3320, %v3320
        %3326 = vrot.lane.b32.xlu0 %v3321, 80
        %v3327 = vpop.permute.xlu0 %3326
        %3328 = vrot.lane.b32.xlu0 %v3322, 80
        %v3329 = vpop.permute.xlu0 %3328
        %3330 = vrot.lane.b32.xlu0 %v3323, 80
        %v3331 = vpop.permute.xlu0 %3330
        %3332 = vrot.lane.b32.xlu0 %v3324, 80
        %v3333 = vpop.permute.xlu0 %3332
        %3334 = vrot.lane.b32.xlu0 %v3325, 80
        %v3335 = vpop.permute.xlu0 %3334
        %v3336 = vunpack.c.l.b16 %v3006
        %v3337 = vunpack.c.l.b16 %v3030
        %v3338 = vunpack.c.l.b16 %v3054
        %v3339 = vunpack.c.l.b16 %v3078
        %v3340 = vunpack.c.l.b16 %v3102
        %v3341 = vunpack.c.l.b16 %v3126
        %v3342 = vunpack.c.l.b16 %v3150
        %v3343 = vunpack.c.l.b16 %v3174
        %v3344 = vunpack.c.l.b16 %v3198
        %v3345 = vpack.c.b16 %v3337, %v3336
        %v3346 = vpack.c.b16 %v3339, %v3338
        %v3347 = vpack.c.b16 %v3341, %v3340
        %v3348 = vpack.c.b16 %v3343, %v3342
        %v3349 = vpack.c.b16 %v3344, %v3344
        %3350 = vrot.lane.b32.xlu0 %v3345, 96
        %v3351 = vpop.permute.xlu0 %3350
        %3352 = vrot.lane.b32.xlu0 %v3346, 96
        %v3353 = vpop.permute.xlu0 %3352
        %3354 = vrot.lane.b32.xlu0 %v3347, 96
        %v3355 = vpop.permute.xlu0 %3354
        %3356 = vrot.lane.b32.xlu0 %v3348, 96
        %v3357 = vpop.permute.xlu0 %3356
        %3358 = vrot.lane.b32.xlu0 %v3349, 96
        %v3359 = vpop.permute.xlu0 %3358
        %v3360 = vunpack.c.l.b16 %v3009
        %v3361 = vunpack.c.l.b16 %v3033
        %v3362 = vunpack.c.l.b16 %v3057
        %v3363 = vunpack.c.l.b16 %v3081
        %v3364 = vunpack.c.l.b16 %v3105
        %v3365 = vunpack.c.l.b16 %v3129
        %v3366 = vunpack.c.l.b16 %v3153
        %v3367 = vunpack.c.l.b16 %v3177
        %v3368 = vunpack.c.l.b16 %v3201
        %v3369 = vpack.c.b16 %v3361, %v3360
        %v3370 = vpack.c.b16 %v3363, %v3362
        %v3371 = vpack.c.b16 %v3365, %v3364
        %v3372 = vpack.c.b16 %v3367, %v3366
        %v3373 = vpack.c.b16 %v3368, %v3368
        %3374 = vrot.lane.b32.xlu0 %v3369, 112
        %v3375 = vpop.permute.xlu0 %3374
        %3376 = vrot.lane.b32.xlu0 %v3370, 112
        %v3377 = vpop.permute.xlu0 %3376
        %3378 = vrot.lane.b32.xlu0 %v3371, 112
        %v3379 = vpop.permute.xlu0 %3378
        %3380 = vrot.lane.b32.xlu0 %v3372, 112
        %v3381 = vpop.permute.xlu0 %3380
        %3382 = vrot.lane.b32.xlu0 %v3373, 112
        %v3383 = vpop.permute.xlu0 %3382
        %v3386 = vsel %vm1507, %v3211, %v3231
        %v3389 = vsel %vm1507, %v3212, %v3233
        %v3392 = vsel %vm1507, %v3213, %v3235
        %v3395 = vsel %vm1507, %v3214, %v3237
        %v3398 = vsel %vm1507, %v3215, %v3239
        %v3400 = vsel %vm1517, %v3386, %v3255
        %v3402 = vsel %vm1517, %v3389, %v3257
        %v3404 = vsel %vm1517, %v3392, %v3259
        %v3406 = vsel %vm1517, %v3395, %v3261
        %v3408 = vsel %vm1517, %v3398, %v3263
        %v3410 = vsel %vm1524, %v3400, %v3279
        %v3412 = vsel %vm1524, %v3402, %v3281
        %v3414 = vsel %vm1524, %v3404, %v3283
        %v3416 = vsel %vm1524, %v3406, %v3285
        %v3418 = vsel %vm1524, %v3408, %v3287
        %v3420 = vsel %vm1531, %v3410, %v3303
        %v3422 = vsel %vm1531, %v3412, %v3305
        %v3424 = vsel %vm1531, %v3414, %v3307
        %v3426 = vsel %vm1531, %v3416, %v3309
        %v3428 = vsel %vm1531, %v3418, %v3311
        %v3430 = vsel %vm1538, %v3420, %v3327
        %v3432 = vsel %vm1538, %v3422, %v3329
        %v3434 = vsel %vm1538, %v3424, %v3331
        %v3436 = vsel %vm1538, %v3426, %v3333
        %v3438 = vsel %vm1538, %v3428, %v3335
        %v3440 = vsel %vm1545, %v3430, %v3351
        %v3442 = vsel %vm1545, %v3432, %v3353
        %v3444 = vsel %vm1545, %v3434, %v3355
        %v3446 = vsel %vm1545, %v3436, %v3357
        %v3448 = vsel %vm1545, %v3438, %v3359
        %v3450 = vsel %vm1552, %v3440, %v3375
        %v3453 = vsel %vm1552, %v3442, %v3377
        %v3456 = vsel %vm1552, %v3444, %v3379
        %v3459 = vsel %vm1552, %v3446, %v3381
        %v3462 = vsel %vm1552, %v3448, %v3383
        %v3463 = vld [vmem:[%s3] sm:$0xf]
        %v3464 = vld [vmem:[%s4] sm:$0xff]
        %3466 = vset.pattern.permute.xlu0 0
        %3467 = vperm.xlu0 %3466, %v3464
        %v3468 = vpop.permute.xlu0 %3467
        %vm3470 = vcmask 588800
        %v3472 = vsel %vm3470, %v3463, 0
        %vm3474 = vcmask 1043456
        %v3475 = vsel %vm3474, %v3462, 0
        %3477 = vmatprep.subr.bf16.mxu0 0
        %3478 = vmatpush1.bf16.msra.mxu0 0
        %3479 = vmatprep.subr.bf16.mxu0 0
        %3480 = vmatpush1.bf16.msra.mxu0 0
        %3481 = vmatprep.subr.bf16.mxu0 0
        %3482 = vmatpush1.bf16.msra.mxu0 0
        %3483 = vmatprep.subr.bf16.mxu0 0
        %3484 = vmatpush1.bf16.msra.mxu0 %v3475
        %3485 = vmatprep.subr.bf16.mxu0 0
        %3486 = vmatpush1.bf16.msra.mxu0 %v3459
        %3487 = vmatprep.subr.bf16.mxu0 0
        %3488 = vmatpush1.bf16.msra.mxu0 %v3456
        %3489 = vmatprep.subr.bf16.mxu0 0
        %3490 = vmatpush1.bf16.msra.mxu0 %v3453
        %3491 = vmatprep.subr.bf16.mxu0 0
        %3492 = vmatpush1.bf16.msra.mxu0 %v3450
        %3493 = vmatprep.subr.bf16.mxu0 0
        %3494 = vmatpush2.bf16.msra.mxu0 0
        %3495 = vmatprep.subr.bf16.mxu0 0
        %3496 = vmatpush2.bf16.msra.mxu0 0
        %3497 = vmatprep.subr.bf16.mxu0 0
        %3498 = vmatpush2.bf16.msra.mxu0 0
        %3499 = vmatprep.subr.bf16.mxu0 0
        %3500 = vmatpush2.bf16.msra.mxu0 0
        %3501 = vmatprep.subr.bf16.mxu0 0
        %3502 = vmatpush2.bf16.msra.mxu0 0
        %3503 = vmatprep.subr.bf16.mxu0 0
        %3504 = vmatpush2.bf16.msra.mxu0 0
        %3505 = vmatprep.subr.bf16.mxu0 0
        %3506 = vmatpush2.bf16.msra.mxu0 0
        %3507 = vmatprep.subr.bf16.mxu0 0
        %3508 = vmatpush2.bf16.msra.mxu0 0
        %3509 = vmatprep.mubr.bf16.mxu0 0
        %3510 = vmatmul.mubr.bf16.gmra.mxu0 %v3472
        %v3511 = vpop.f32.mrf.mxu0
        %v3512 = vadd.f32 %v3468, %v3511
        %v3513 = vpop.f32.mrf.mxu0
        %v3514 = vpop.f32.mrf.mxu0
        %v3515 = vpop.f32.mrf.mxu0
        %3516 = vdwg.mxu0
        %v3517 = vmax.f32 %v3512, 0.0
        %3518 = vst [vmem:[%s256] sm:$0xff] %v3517
        %s3519 = sand.u32 %s154, 1
        %s3520 = scalar_lea.sflag [#allocation6], %s3519
        %s3521 = sand.u32 %s154, 1
        %s3522 = smul.addr %s3521, 8
        %s3523 = scalar_lea.vmem [#allocation7], %s3522
        // Predicated region
        $region45: #{tpu_custom_call.1} parent=39 // pred_check
          %p3524 = pneg %p164
        $region46: #{tpu_custom_call.1} parent=39 // pred_check_branch
          %3526 = sbr.rel (%p3524) target = $region48
        $region47: #{tpu_custom_call.1} parent=39 // pred_region
          %s3528 = ssub.s32 128, 128
          %3529 = vsyncadd %s3520, %s3528
          %s3530 = smul.addr %s26, 2
          %s3531 = sadd.s32 %s27, %s3530
          %s3532 = smul.addr %s3531, 128
          %s3533 = scalar_lea.hbm %s5, %s3532
          %s3535 = sshll.u32 %s3523, 4
          %s3536 = int_to_ptr.vmem [resolvable:$true] %s3535
          %3538 = dma.vmem_to_hbm [thread:$0]  %s3536, 128, %s3533, %s3520
        $region48: #{tpu_custom_call.1} parent=39 // pred_fallthru
          _
      $region40: #{tpu_custom_call.1} parent=5 // pred_fallthru
        _
      %p3539 = scmp.le.s32.totalorder 2, %s17
      // Predicated region
      $region49: #{tpu_custom_call.1} parent=5 // pred_check
        %p3540 = pneg %p3539
      $region50: #{tpu_custom_call.1} parent=5 // pred_check_branch
        %3542 = sbr.rel (%p3540) target = $region52
      $region51: #{tpu_custom_call.1} parent=5 // pred_region
        %s3543 = ssub.s32 %s17, 2
        // Predicated region
        $region53: #{tpu_custom_call.1} parent=51 // pred_check
          %p3544 = pneg %p170
        $region54: #{tpu_custom_call.1} parent=51 // pred_check_branch
          %3546 = sbr.rel (%p3544) target = $region56
        $region55: #{tpu_custom_call.1} parent=51 // pred_region
          %s3547 = sand.u32 %s155, 1
          %s3548 = scalar_lea.sflag [#allocation6], %s3547
          %s3549 = sand.u32 %s155, 1
          %s3550 = smul.addr %s3549, 8
          %s3551 = scalar_lea.vmem [#allocation7], %s3550
          %3552 = dma.done %s3548, 128
        $region56: #{tpu_custom_call.1} parent=51 // pred_fallthru
          _
      $region52: #{tpu_custom_call.1} parent=5 // pred_fallthru
        _
    $region6: #{tpu_custom_call.1} parent=1 // loop_footer
      %s21 = sadd.s32 1, %s17
    $region7: #{tpu_custom_call.1} parent=1 // loop_footer_branch
      %16 = sbr.rel target = $region3
    $region8: #{tpu_custom_call.1} parent=1 // loop_exit
      _
    %3553 = vsyncpa [#allocation5], 1
    %s3554 = scalar_lea.sflag [#allocation5], 1
    %3555 = vsyncpa %s3554, 1
    %3556 = vsyncpa [#allocation6], 1
    %s3557 = scalar_lea.sflag [#allocation6], 1
    %3558 = vsyncpa %s3557, 1

</llo_original>
